<compile_context>
chip_gen: v7x
topology: tpu7x:2x2x1
jax: 0.10.0
libtpu: 0.0.40
codegen_flags: <defaults>
</compile_context>

<pallas_src>
import functools

import jax
import jax.numpy as jnp
from jax.experimental import pallas as pl
from jax.experimental.pallas import tpu as pltpu


def _cdiv(a, b):
    return -(-a // b)


# ----------------------------------------------------------------------------
# Fused kernel: Conv3x3(pad=1) + ReLU + global-average-pool + Classifier head
# One grid step == one block of block_B images.
# ----------------------------------------------------------------------------
def color_model_kernel(x_ref, wrow_ref, bc_ref, wh_ref, bh_ref, out_ref, *, H, W):
    # x_ref   : (blk, H+2, (W+2)*Cin)  bf16  lane-dense padded image block (NHWC flattened)
    # wrow_ref: (3, (W+2)*Cin, W*Cf)   bf16  row-unrolled conv weight, one slab per dh
    # bc_ref  : (1, W*Cf)              f32   conv bias tiled over w
    # wh_ref  : (Cf, E+1)              bf16  [we | wr] concatenated head weight
    # bh_ref  : (1, E+1)               f32   [be | br] concatenated head bias
    # out_ref : (1, blk, E+1)          f32   packed [embedding | regression]
    blk = x_ref.shape[0]
    WpC = x_ref.shape[2]            # (W+2)*Cin
    WCf = bc_ref.shape[1]           # W*Cf
    Cf = wh_ref.shape[0]
    E = wh_ref.shape[1] - 1

    x = x_ref[...]                                           # (blk, H+2, WpC) bf16

    # ---- conv3x3: 3 wide-K MXU matmuls (K = (W+2)*Cin), all taps folded ----
    # Output row (b*H + h), lane (w*Cf + f) == conv[b, h, w, f].
    acc = None
    for dh in range(3):
        rows = x[:, dh:dh + H, :].reshape(blk * H, WpC)       # leading-dim merge only
        prod = jnp.dot(rows, wrow_ref[dh],
                       preferred_element_type=jnp.float32)    # (blk*H, W*Cf) f32
        acc = prod if acc is None else acc + prod

    conv = jnp.maximum(acc + bc_ref[...], 0.0)                # bias + ReLU (f32, VPU)

    # ---- fused global average pool (feature map never leaves the kernel) ----
    per_img = jnp.sum(conv.reshape(blk, H, WCf), axis=1)      # (blk, W*Cf)
    feats = per_img[:, 0:Cf]
    for w in range(1, W):                                     # 128-aligned lane slices
        feats = feats + per_img[:, w * Cf:(w + 1) * Cf]
    feats = feats * (1.0 / (H * W))                           # (blk, Cf) f32

    # ---- classifier head: one matmul for [embedding | regression] ----
    head = jnp.dot(feats.astype(wh_ref.dtype), wh_ref[...],
                   preferred_element_type=jnp.float32) + bh_ref[...]   # (blk, E+1)
    emb = head[:, :E]
    reg = head[:, E:E + 1]
    # F.normalize(p=2, dim=1): x / max(||x||, 1e-12) == x * rsqrt(max(ss, 1e-24))
    inv = jax.lax.rsqrt(
        jnp.maximum(jnp.sum(emb * emb, axis=1, keepdims=True), 1e-24))

    out_ref[:, :, 0:E] = (emb * inv).reshape(1, blk, E).astype(out_ref.dtype)
    out_ref[:, :, E:E + 1] = reg.reshape(1, blk, 1).astype(out_ref.dtype)


# ----------------------------------------------------------------------------
# Host-side weight prep: row-unroll the 3x3 conv taps so the whole (dw, Cin)
# neighbourhood is folded into the matmul contraction.
# ----------------------------------------------------------------------------
def _build_row_weight(conv_w, W, dtype=jnp.bfloat16):
    # conv_w: (9, Cin, Cf), tap index t = dh*3 + dw (row-major 3x3 window).
    # Returns (3, (W+2)*Cin, W*Cf) with
    #   wrow[dh, wt*Cin + c, w*Cf + f] = conv_w[dh*3 + (wt - w), c, f]  if wt-w in {0,1,2}
    _, Cin, Cf = conv_w.shape
    w4 = conv_w.reshape(3, 3, Cin, Cf)                        # (dh, dw, c, f)
    Wp = W + 2
    wrow = jnp.zeros((3, Wp, Cin, W, Cf), conv_w.dtype)
    for w in range(W):
        wrow = wrow.at[:, w:w + 3, :, w, :].set(w4)
    return wrow.reshape(3, Wp * Cin, W * Cf).astype(dtype)


# ----------------------------------------------------------------------------
# ColorModel forward (NCHW in, like PyTorch) -> (regression, embedding)
# ----------------------------------------------------------------------------
def color_model_forward(x_nchw, params, *, block_b=None):
    B, Cin, H, W = x_nchw.shape
    Cf = params["conv_b"].shape[0]
    E = params["we"].shape[1]

    if block_b is None:
        # >= 2 grid steps whenever B >= 2 (both TCs on v7x), up to 8 images per
        # step to amortize the ~0.35us per-grid-step overhead on v5e/v6e.
        block_b = max(1, min(8, _cdiv(B, 2)))
    grid_b = _cdiv(B, block_b)
    b_pad = grid_b * block_b

    # Lane-dense layout: NCHW -> NHWC, 1-px spatial zero pad, flatten (W+2, Cin)
    # into the lane dimension, bf16 for the conv matmul operands.
    x_nhwc = jnp.transpose(x_nchw, (0, 2, 3, 1))
    x_pad = jnp.pad(x_nhwc, ((0, b_pad - B), (1, 1), (1, 1), (0, 0)))
    x_flat = x_pad.reshape(b_pad, H + 2, (W + 2) * Cin).astype(jnp.bfloat16)

    # Row-unrolled conv weight and w-tiled conv bias (built once).
    wrow = _build_row_weight(params["conv_w"], W)
    bc = jnp.tile(params["conv_b"].reshape(1, 1, Cf), (1, W, 1))
    bc = bc.reshape(1, W * Cf).astype(jnp.float32)

    # Concatenate the two head linears: [we | wr], [be | br] -> one matmul.
    wh = jnp.concatenate([params["we"], params["wr"]], axis=1).astype(jnp.bfloat16)
    bh = jnp.concatenate([params["be"], params["br"]]).reshape(1, E + 1)
    bh = bh.astype(jnp.float32)

    kernel = functools.partial(color_model_kernel, H=H, W=W)
    out = pl.pallas_call(
        kernel,
        out_shape=jax.ShapeDtypeStruct((grid_b, block_b, E + 1), jnp.float32),
        grid=(grid_b,),
        in_specs=[
            # One block of images per grid step; last two dims == full dims.
            pl.BlockSpec((block_b, H + 2, (W + 2) * Cin), lambda g: (g, 0, 0)),
            # Weights/biases: constant block index -> fetched once, VMEM-resident.
            pl.BlockSpec((3, (W + 2) * Cin, W * Cf), lambda g: (0, 0, 0)),
            pl.BlockSpec((1, W * Cf), lambda g: (0, 0)),
            pl.BlockSpec((Cf, E + 1), lambda g: (0, 0)),
            pl.BlockSpec((1, E + 1), lambda g: (0, 0)),
        ],
        out_specs=pl.BlockSpec((1, block_b, E + 1), lambda g: (g, 0, 0)),
        compiler_params=pltpu.CompilerParams(
            dimension_semantics=("parallel",)),   # 2-TC sharding on v7x
    )(x_flat, wrow, bc, wh, bh)

    packed = out.reshape(b_pad, E + 1)[:B]
    regression = packed[:, E:E + 1]
    embedding = packed[:, :E]
    return regression, embedding


# ----------------------------------------------------------------------------
# Pure-JAX reference (mirrors the bf16 casts of the matmul operands)
# ----------------------------------------------------------------------------
def reference_forward(x_nchw, params):
    x = jnp.transpose(x_nchw, (0, 2, 3, 1))
    B, H, W, Cin = x.shape
    xp = jnp.pad(x, ((0, 0), (1, 1), (1, 1), (0, 0)))
    xp = xp.astype(jnp.bfloat16).astype(jnp.float32)
    wc = params["conv_w"].astype(jnp.bfloat16).astype(jnp.float32)
    conv = None
    for dh in range(3):
        for dw in range(3):
            win = xp[:, dh:dh + H, dw:dw + W, :]
            t = jnp.einsum("bhwc,cf->bhwf", win, wc[dh * 3 + dw])
            conv = t if conv is None else conv + t
    conv = jnp.maximum(conv + params["conv_b"], 0.0)
    feats = jnp.mean(conv, axis=(1, 2))
    f16 = feats.astype(jnp.bfloat16).astype(jnp.float32)
    wr = params["wr"].astype(jnp.bfloat16).astype(jnp.float32)
    we = params["we"].astype(jnp.bfloat16).astype(jnp.float32)
    reg = f16 @ wr + params["br"]
    emb = f16 @ we + params["be"]
    emb = emb / jnp.maximum(jnp.linalg.norm(emb, axis=1, keepdims=True), 1e-12)
    return reg, emb


def init_params(key, c_in=3, c_feat=128, embed_dim=128):
    ks = jax.random.split(key, 6)
    sc = 1.0 / jnp.sqrt(9.0 * c_in)
    sl = 1.0 / jnp.sqrt(float(c_feat))
    return {
        # conv taps ordered (dh, dw) row-major: (9, Cin, Cout)
        "conv_w": jax.random.normal(ks[0], (9, c_in, c_feat), jnp.float32) * sc,
        "conv_b": jax.random.normal(ks[1], (c_feat,), jnp.float32) * sc,
        # Classifier: Linear(C_feat -> 1)
        "wr": jax.random.normal(ks[2], (c_feat, 1), jnp.float32) * sl,
        "br": jax.random.normal(ks[3], (1,), jnp.float32) * sl,
        # Embedding layers: Linear(C_feat -> 128)
        "we": jax.random.normal(ks[4], (c_feat, embed_dim), jnp.float32) * sl,
        "be": jax.random.normal(ks[5], (embed_dim,), jnp.float32) * sl,
    }


if __name__ == "__main__":
    # Small shapes consistent with the module's forward (image batch, NCHW).
    root = jax.random.PRNGKey(0)
    kx, kp = jax.random.split(root)
    x = jax.random.normal(kx, (2, 3, 16, 16), jnp.float32)
    params = init_params(kp)

    regression, embedding = jax.jit(color_model_forward)(x, params)
    jax.block_until_ready((regression, embedding))

    assert regression.shape == (2, 1)
    assert embedding.shape == (2, 128)
    # embeddings are L2-normalized along dim=1
    norms = jnp.linalg.norm(embedding, axis=1)
    assert bool(jnp.all(jnp.abs(norms - 1.0) < 1e-4))

    # numerical check against the pure-JAX reference
    reg_ref, emb_ref = reference_forward(x, params)
    assert bool(jnp.allclose(regression, reg_ref, atol=2e-3, rtol=2e-3))
    assert bool(jnp.allclose(embedding, emb_ref, atol=2e-3, rtol=2e-3))

    print("KERNEL_OK")
</pallas_src>

<mosaic_0001>
module attributes {stable_mosaic.version = 11 : i64} {
  func.func @color_model_kernel(%arg0: i32, %arg1: memref<1x18x54xbf16, #tpu.memory_space<vmem>>, %arg2: memref<3x54x2048xbf16, #tpu.memory_space<vmem>>, %arg3: memref<1x2048xf32, #tpu.memory_space<vmem>>, %arg4: memref<128x129xbf16, #tpu.memory_space<vmem>>, %arg5: memref<1x129xf32, #tpu.memory_space<vmem>>, %arg6: memref<1x1x129xf32, #tpu.memory_space<vmem>>) attributes {dimension_semantics = [#tpu.dimension_semantics<parallel>], iteration_bounds = array<i64: 2>, scalar_prefetch = 0 : i64, scratch_operands = 0 : i64, tpu.core_type = #tpu.core_type<tc>, window_params = [{transform_indices = @transform_0, window_bounds = array<i64: 1, 18, 54>}, {pipeline_mode = #tpu.pipeline_mode<synchronous>, transform_indices = @transform_1, window_bounds = array<i64: 3, 54, 2048>}, {pipeline_mode = #tpu.pipeline_mode<synchronous>, transform_indices = @transform_2, window_bounds = array<i64: 1, 2048>}, {pipeline_mode = #tpu.pipeline_mode<synchronous>, transform_indices = @transform_3, window_bounds = array<i64: 128, 129>}, {pipeline_mode = #tpu.pipeline_mode<synchronous>, transform_indices = @transform_4, window_bounds = array<i64: 1, 129>}, {transform_indices = @transform_5, window_bounds = array<i64: 1, 1, 129>}]} {
    %c0 = arith.constant 0 : index
    %c0_0 = arith.constant 0 : index
    %c0_1 = arith.constant 0 : index
    %0 = vector.load %arg1[%c0, %c0_0, %c0_1] : memref<1x18x54xbf16, #tpu.memory_space<vmem>>, vector<1x18x54xbf16>
    %1 = vector.extract_strided_slice %0 {offsets = [0, 0, 0], sizes = [1, 16, 54], strides = [1, 1, 1]} : vector<1x18x54xbf16> to vector<1x16x54xbf16>
    %2 = vector.shape_cast %1 : vector<1x16x54xbf16> to vector<16x54xbf16>
    %c0_2 = arith.constant 0 : index
    %c0_3 = arith.constant 0 : index
    %c0_4 = arith.constant 0 : index
    %3 = vector.load %arg2[%c0_2, %c0_3, %c0_4] : memref<3x54x2048xbf16, #tpu.memory_space<vmem>>, vector<1x54x2048xbf16>
    %4 = vector.shape_cast %3 : vector<1x54x2048xbf16> to vector<54x2048xbf16>
    %cst = arith.constant dense<0.000000e+00> : vector<16x2048xf32>
    %5 = tpu.matmul %2, %4, %cst {dimension_numbers = #tpu.dot_dimension_numbers<[1], [0], [0], [1], [0, 0, 1, 1], [], []>} : vector<16x54xbf16>, vector<54x2048xbf16>, vector<16x2048xf32> -> vector<16x2048xf32>
    %6 = vector.extract_strided_slice %0 {offsets = [0, 1, 0], sizes = [1, 16, 54], strides = [1, 1, 1]} : vector<1x18x54xbf16> to vector<1x16x54xbf16>
    %7 = vector.shape_cast %6 : vector<1x16x54xbf16> to vector<16x54xbf16>
    %c1 = arith.constant 1 : index
    %c0_5 = arith.constant 0 : index
    %c0_6 = arith.constant 0 : index
    %8 = vector.load %arg2[%c1, %c0_5, %c0_6] : memref<3x54x2048xbf16, #tpu.memory_space<vmem>>, vector<1x54x2048xbf16>
    %9 = vector.shape_cast %8 : vector<1x54x2048xbf16> to vector<54x2048xbf16>
    %cst_7 = arith.constant dense<0.000000e+00> : vector<16x2048xf32>
    %10 = tpu.matmul %7, %9, %cst_7 {dimension_numbers = #tpu.dot_dimension_numbers<[1], [0], [0], [1], [0, 0, 1, 1], [], []>} : vector<16x54xbf16>, vector<54x2048xbf16>, vector<16x2048xf32> -> vector<16x2048xf32>
    %11 = arith.addf %5, %10 : vector<16x2048xf32>
    %12 = vector.extract_strided_slice %0 {offsets = [0, 2, 0], sizes = [1, 16, 54], strides = [1, 1, 1]} : vector<1x18x54xbf16> to vector<1x16x54xbf16>
    %13 = vector.shape_cast %12 : vector<1x16x54xbf16> to vector<16x54xbf16>
    %c2 = arith.constant 2 : index
    %c0_8 = arith.constant 0 : index
    %c0_9 = arith.constant 0 : index
    %14 = vector.load %arg2[%c2, %c0_8, %c0_9] : memref<3x54x2048xbf16, #tpu.memory_space<vmem>>, vector<1x54x2048xbf16>
    %15 = vector.shape_cast %14 : vector<1x54x2048xbf16> to vector<54x2048xbf16>
    %cst_10 = arith.constant dense<0.000000e+00> : vector<16x2048xf32>
    %16 = tpu.matmul %13, %15, %cst_10 {dimension_numbers = #tpu.dot_dimension_numbers<[1], [0], [0], [1], [0, 0, 1, 1], [], []>} : vector<16x54xbf16>, vector<54x2048xbf16>, vector<16x2048xf32> -> vector<16x2048xf32>
    %17 = arith.addf %11, %16 : vector<16x2048xf32>
    %c0_11 = arith.constant 0 : index
    %c0_12 = arith.constant 0 : index
    %18 = vector.load %arg3[%c0_11, %c0_12] : memref<1x2048xf32, #tpu.memory_space<vmem>>, vector<1x2048xf32>
    %19 = vector.broadcast %18 : vector<1x2048xf32> to vector<16x2048xf32>
    %20 = arith.addf %17, %19 : vector<16x2048xf32>
    %cst_13 = arith.constant 0.000000e+00 : f32
    %21 = vector.broadcast %cst_13 : f32 to vector<16x2048xf32>
    %22 = arith.maximumf %20, %21 : vector<16x2048xf32>
    %23 = vector.shape_cast %22 : vector<16x2048xf32> to vector<1x16x2048xf32>
    %cst_14 = arith.constant dense<0.000000e+00> : vector<1x2048xf32>
    %24 = vector.multi_reduction <add>, %23, %cst_14 [1] : vector<1x16x2048xf32> to vector<1x2048xf32>
    %25 = vector.extract_strided_slice %24 {offsets = [0, 0], sizes = [1, 128], strides = [1, 1]} : vector<1x2048xf32> to vector<1x128xf32>
    %26 = vector.extract_strided_slice %24 {offsets = [0, 128], sizes = [1, 128], strides = [1, 1]} : vector<1x2048xf32> to vector<1x128xf32>
    %27 = arith.addf %25, %26 : vector<1x128xf32>
    %28 = vector.extract_strided_slice %24 {offsets = [0, 256], sizes = [1, 128], strides = [1, 1]} : vector<1x2048xf32> to vector<1x128xf32>
    %29 = arith.addf %27, %28 : vector<1x128xf32>
    %30 = vector.extract_strided_slice %24 {offsets = [0, 384], sizes = [1, 128], strides = [1, 1]} : vector<1x2048xf32> to vector<1x128xf32>
    %31 = arith.addf %29, %30 : vector<1x128xf32>
    %32 = vector.extract_strided_slice %24 {offsets = [0, 512], sizes = [1, 128], strides = [1, 1]} : vector<1x2048xf32> to vector<1x128xf32>
    %33 = arith.addf %31, %32 : vector<1x128xf32>
    %34 = vector.extract_strided_slice %24 {offsets = [0, 640], sizes = [1, 128], strides = [1, 1]} : vector<1x2048xf32> to vector<1x128xf32>
    %35 = arith.addf %33, %34 : vector<1x128xf32>
    %36 = vector.extract_strided_slice %24 {offsets = [0, 768], sizes = [1, 128], strides = [1, 1]} : vector<1x2048xf32> to vector<1x128xf32>
    %37 = arith.addf %35, %36 : vector<1x128xf32>
    %38 = vector.extract_strided_slice %24 {offsets = [0, 896], sizes = [1, 128], strides = [1, 1]} : vector<1x2048xf32> to vector<1x128xf32>
    %39 = arith.addf %37, %38 : vector<1x128xf32>
    %40 = vector.extract_strided_slice %24 {offsets = [0, 1024], sizes = [1, 128], strides = [1, 1]} : vector<1x2048xf32> to vector<1x128xf32>
    %41 = arith.addf %39, %40 : vector<1x128xf32>
    %42 = vector.extract_strided_slice %24 {offsets = [0, 1152], sizes = [1, 128], strides = [1, 1]} : vector<1x2048xf32> to vector<1x128xf32>
    %43 = arith.addf %41, %42 : vector<1x128xf32>
    %44 = vector.extract_strided_slice %24 {offsets = [0, 1280], sizes = [1, 128], strides = [1, 1]} : vector<1x2048xf32> to vector<1x128xf32>
    %45 = arith.addf %43, %44 : vector<1x128xf32>
    %46 = vector.extract_strided_slice %24 {offsets = [0, 1408], sizes = [1, 128], strides = [1, 1]} : vector<1x2048xf32> to vector<1x128xf32>
    %47 = arith.addf %45, %46 : vector<1x128xf32>
    %48 = vector.extract_strided_slice %24 {offsets = [0, 1536], sizes = [1, 128], strides = [1, 1]} : vector<1x2048xf32> to vector<1x128xf32>
    %49 = arith.addf %47, %48 : vector<1x128xf32>
    %50 = vector.extract_strided_slice %24 {offsets = [0, 1664], sizes = [1, 128], strides = [1, 1]} : vector<1x2048xf32> to vector<1x128xf32>
    %51 = arith.addf %49, %50 : vector<1x128xf32>
    %52 = vector.extract_strided_slice %24 {offsets = [0, 1792], sizes = [1, 128], strides = [1, 1]} : vector<1x2048xf32> to vector<1x128xf32>
    %53 = arith.addf %51, %52 : vector<1x128xf32>
    %54 = vector.extract_strided_slice %24 {offsets = [0, 1920], sizes = [1, 128], strides = [1, 1]} : vector<1x2048xf32> to vector<1x128xf32>
    %55 = arith.addf %53, %54 : vector<1x128xf32>
    %cst_15 = arith.constant 3.906250e-03 : f32
    %56 = vector.broadcast %cst_15 : f32 to vector<1x128xf32>
    %57 = arith.mulf %55, %56 : vector<1x128xf32>
    %58 = arith.truncf %57 : vector<1x128xf32> to vector<1x128xbf16>
    %c0_16 = arith.constant 0 : index
    %c0_17 = arith.constant 0 : index
    %59 = vector.load %arg4[%c0_16, %c0_17] : memref<128x129xbf16, #tpu.memory_space<vmem>>, vector<128x129xbf16>
    %cst_18 = arith.constant dense<0.000000e+00> : vector<1x129xf32>
    %60 = tpu.matmul %58, %59, %cst_18 {dimension_numbers = #tpu.dot_dimension_numbers<[1], [0], [0], [1], [0, 0, 1, 1], [], []>} : vector<1x128xbf16>, vector<128x129xbf16>, vector<1x129xf32> -> vector<1x129xf32>
    %c0_19 = arith.constant 0 : index
    %c0_20 = arith.constant 0 : index
    %61 = vector.load %arg5[%c0_19, %c0_20] : memref<1x129xf32, #tpu.memory_space<vmem>>, vector<1x129xf32>
    %62 = arith.addf %60, %61 : vector<1x129xf32>
    %63 = vector.extract_strided_slice %62 {offsets = [0, 0], sizes = [1, 128], strides = [1, 1]} : vector<1x129xf32> to vector<1x128xf32>
    %64 = vector.extract_strided_slice %62 {offsets = [0, 128], sizes = [1, 1], strides = [1, 1]} : vector<1x129xf32> to vector<1x1xf32>
    %65 = arith.mulf %63, %63 : vector<1x128xf32>
    %cst_21 = arith.constant dense<0.000000e+00> : vector<1xf32>
    %66 = vector.multi_reduction <add>, %65, %cst_21 [1] : vector<1x128xf32> to vector<1xf32>
    %67 = vector.shape_cast %66 : vector<1xf32> to vector<1x1xf32>
    %cst_22 = arith.constant 1.000000e-24 : f32
    %68 = vector.broadcast %cst_22 : f32 to vector<1x1xf32>
    %69 = arith.maximumf %67, %68 : vector<1x1xf32>
    %70 = math.rsqrt %69 : vector<1x1xf32>
    %71 = vector.broadcast %70 : vector<1x1xf32> to vector<1x128xf32>
    %72 = arith.mulf %63, %71 : vector<1x128xf32>
    %73 = vector.shape_cast %72 : vector<1x128xf32> to vector<1x1x128xf32>
    %c0_23 = arith.constant 0 : index
    %c0_24 = arith.constant 0 : index
    %c0_25 = arith.constant 0 : index
    %74 = vector.load %arg6[%c0_23, %c0_24, %c0_25] : memref<1x1x129xf32, #tpu.memory_space<vmem>>, vector<1x1x128xf32>
    tpu.vector_store %arg6[%c0_23, %c0_24, %c0_25], %73 {strides = array<i32>} : memref<1x1x129xf32, #tpu.memory_space<vmem>>, vector<1x1x128xf32>,
    %75 = vector.shape_cast %64 : vector<1x1xf32> to vector<1x1x1xf32>
    %c0_26 = arith.constant 0 : index
    %c0_27 = arith.constant 0 : index
    %c128 = arith.constant 128 : index
    %76 = vector.load %arg6[%c0_26, %c0_27, %c128] : memref<1x1x129xf32, #tpu.memory_space<vmem>>, vector<1x1x1xf32>
    tpu.vector_store %arg6[%c0_26, %c0_27, %c128], %75 {strides = array<i32>} : memref<1x1x129xf32, #tpu.memory_space<vmem>>, vector<1x1x1xf32>,
    return
  }
  func.func @transform_0(%arg0: i32) -> (i32, i32, i32) {
    %c0_i32 = arith.constant 0 : i32
    %c0_i32_0 = arith.constant 0 : i32
    %c0_i32_1 = arith.constant 0 : i32
    return %arg0, %c0_i32, %c0_i32_0 : i32, i32, i32
  }
  func.func @transform_1(%arg0: i32) -> (i32, i32, i32) {
    %c0_i32 = arith.constant 0 : i32
    %c0_i32_0 = arith.constant 0 : i32
    %c0_i32_1 = arith.constant 0 : i32
    %c0_i32_2 = arith.constant 0 : i32
    return %c0_i32, %c0_i32_0, %c0_i32_1 : i32, i32, i32
  }
  func.func @transform_2(%arg0: i32) -> (i32, i32) {
    %c0_i32 = arith.constant 0 : i32
    %c0_i32_0 = arith.constant 0 : i32
    %c0_i32_1 = arith.constant 0 : i32
    return %c0_i32, %c0_i32_0 : i32, i32
  }
  func.func @transform_3(%arg0: i32) -> (i32, i32) {
    %c0_i32 = arith.constant 0 : i32
    %c0_i32_0 = arith.constant 0 : i32
    %c0_i32_1 = arith.constant 0 : i32
    return %c0_i32, %c0_i32_0 : i32, i32
  }
  func.func @transform_4(%arg0: i32) -> (i32, i32) {
    %c0_i32 = arith.constant 0 : i32
    %c0_i32_0 = arith.constant 0 : i32
    %c0_i32_1 = arith.constant 0 : i32
    return %c0_i32, %c0_i32_0 : i32, i32
  }
  func.func @transform_5(%arg0: i32) -> (i32, i32, i32) {
    %c0_i32 = arith.constant 0 : i32
    %c0_i32_0 = arith.constant 0 : i32
    %c0_i32_1 = arith.constant 0 : i32
    return %arg0, %c0_i32, %c0_i32_0 : i32, i32, i32
  }
}

</mosaic_0001>

<llo_original>
// kernel: color_model_forward.1
$region0: #{color_model_forward.1}
  #allocation0 [shape = 'u32[]', space=smem, size = 0x4, offset = 0x4, fixed_abs, tag = 'smem constant byte address 0x4 - core index']
  #allocation1 [shape = 'u32[144,128]{1,0:T(1,128)}', space=vmem, size = 0x12000, scoped, tag = 'internal scratch']
  %s0 = inlined_call_operand.vmem [shape: bf16[2,18,54], index: 0, kind: input, shape index: {}]
  %s1 = inlined_call_operand.vmem [shape: bf16[3,54,2048], index: 1, kind: input, shape index: {}]
  %s2 = inlined_call_operand.vmem [shape: f32[1,2048], index: 2, kind: input, shape index: {}]
  %s3 = inlined_call_operand.vmem [shape: bf16[128,129], index: 3, kind: input, shape index: {}]
  %s4 = inlined_call_operand.vmem [shape: f32[1,129], index: 4, kind: input, shape index: {}]
  %s5 = inlined_call_operand.vmem [shape: f32[2,1,129], index: 5, kind: output, shape index: {}]
  %s6 = sld [smem:[#allocation0]]
  $region53: #{color_model_forward.1} parent=0
    _
  %s8 = ssub.s32 1, %s6
  %s9 = scalar_select 0, %s8, %s6
  loop: start=0, step=1, limit=4
  $region2: #{color_model_forward.1} parent=0 // loop_pre_header
    _
  $region3: #{color_model_forward.1} parent=0 // loop_header
    %s11 = sphi 0, %s15
    %p12 = scmp.ge.s32.totalorder %s11, 4
    %s21 = sphi 0, %s23
    %s24 = sphi 0, %s21
    %s25 = sphi 0, %s24
    %s41 = sphi 0, %s25
    %s45 = sphi 0, %s45
    %s47 = sphi 0, %s45
    %s48 = sphi 0, %s47
    %s62 = sphi 0, %s48
    %s66 = sphi 0, %s66
    %s68 = sphi 0, %s66
    %s69 = sphi 0, %s68
    %s83 = sphi 0, %s69
    %s87 = sphi 0, %s87
    %s89 = sphi 0, %s87
    %s90 = sphi 0, %s89
    %s104 = sphi 0, %s90
    %s108 = sphi 0, %s108
    %s110 = sphi 0, %s108
    %s111 = sphi 0, %s110
    %s125 = sphi 0, %s111
    %s131 = sphi 0, %s133
    %s134 = sphi 0, %s131
    %s135 = sphi 0, %s134
    %s151 = sphi 0, %s135
  $region4: #{color_model_forward.1} parent=0 // loop_header_branch
    %14 = sbr.rel (%p12) target = $region8
  $region5: #{color_model_forward.1} parent=0 // loop_body
    %s16 = ssub.s32 %s11, 1
    %s17 = ssub.s32 %s11, 2
    %s18 = sadd.s32 %s11, 1
    %s19 = ssub.s32 %s11, %s18
    %p20 = scmp.eq.s32.totalorder %s19, 0
    %s22 = sadd.s32 %s21, 1
    %s23 = scalar_select %p20, %s21, %s22
    %p26 = pneg %p20
    %p27 = scmp.eq.s32.totalorder %s11, 1
    %p28 = por %p26, %p27
    %p29 = scmp.ne.s32.totalorder %s21, %s24
    %p30 = scmp.eq.s32.totalorder %s11, 0
    %p31 = por %p29, %p30
    %p32 = scmp.ne.s32.totalorder %s21, %s24
    %p33 = scmp.eq.s32.totalorder %s16, 1
    %p34 = por %p32, %p33
    %p35 = scmp.ne.s32.totalorder %s24, %s25
    %p36 = scmp.eq.s32.totalorder %s16, 0
    %p37 = por %p35, %p36
    %p38 = scmp.ne.s32.totalorder %s24, %s25
    %p39 = scmp.eq.s32.totalorder %s17, 1
    %p40 = por %p38, %p39
    %p42 = scmp.ne.s32.totalorder %s25, %s41
    %p43 = scmp.eq.s32.totalorder %s17, 0
    %p44 = por %p42, %p43
    %s46 = sadd.s32 %s45, 1
    %p49 = scmp.eq.s32.totalorder %s11, 1
    %p50 = scmp.ne.s32.totalorder %s45, %s47
    %p51 = scmp.eq.s32.totalorder %s11, 0
    %p52 = por %p50, %p51
    %p53 = scmp.ne.s32.totalorder %s45, %s47
    %p54 = scmp.eq.s32.totalorder %s16, 1
    %p55 = por %p53, %p54
    %p56 = scmp.ne.s32.totalorder %s47, %s48
    %p57 = scmp.eq.s32.totalorder %s16, 0
    %p58 = por %p56, %p57
    %p59 = scmp.ne.s32.totalorder %s47, %s48
    %p60 = scmp.eq.s32.totalorder %s17, 1
    %p61 = por %p59, %p60
    %p63 = scmp.ne.s32.totalorder %s48, %s62
    %p64 = scmp.eq.s32.totalorder %s17, 0
    %p65 = por %p63, %p64
    %s67 = sadd.s32 %s66, 1
    %p70 = scmp.eq.s32.totalorder %s11, 1
    %p71 = scmp.ne.s32.totalorder %s66, %s68
    %p72 = scmp.eq.s32.totalorder %s11, 0
    %p73 = por %p71, %p72
    %p74 = scmp.ne.s32.totalorder %s66, %s68
    %p75 = scmp.eq.s32.totalorder %s16, 1
    %p76 = por %p74, %p75
    %p77 = scmp.ne.s32.totalorder %s68, %s69
    %p78 = scmp.eq.s32.totalorder %s16, 0
    %p79 = por %p77, %p78
    %p80 = scmp.ne.s32.totalorder %s68, %s69
    %p81 = scmp.eq.s32.totalorder %s17, 1
    %p82 = por %p80, %p81
    %p84 = scmp.ne.s32.totalorder %s69, %s83
    %p85 = scmp.eq.s32.totalorder %s17, 0
    %p86 = por %p84, %p85
    %s88 = sadd.s32 %s87, 1
    %p91 = scmp.eq.s32.totalorder %s11, 1
    %p92 = scmp.ne.s32.totalorder %s87, %s89
    %p93 = scmp.eq.s32.totalorder %s11, 0
    %p94 = por %p92, %p93
    %p95 = scmp.ne.s32.totalorder %s87, %s89
    %p96 = scmp.eq.s32.totalorder %s16, 1
    %p97 = por %p95, %p96
    %p98 = scmp.ne.s32.totalorder %s89, %s90
    %p99 = scmp.eq.s32.totalorder %s16, 0
    %p100 = por %p98, %p99
    %p101 = scmp.ne.s32.totalorder %s89, %s90
    %p102 = scmp.eq.s32.totalorder %s17, 1
    %p103 = por %p101, %p102
    %p105 = scmp.ne.s32.totalorder %s90, %s104
    %p106 = scmp.eq.s32.totalorder %s17, 0
    %p107 = por %p105, %p106
    %s109 = sadd.s32 %s108, 1
    %p112 = scmp.eq.s32.totalorder %s11, 1
    %p113 = scmp.ne.s32.totalorder %s108, %s110
    %p114 = scmp.eq.s32.totalorder %s11, 0
    %p115 = por %p113, %p114
    %p116 = scmp.ne.s32.totalorder %s108, %s110
    %p117 = scmp.eq.s32.totalorder %s16, 1
    %p118 = por %p116, %p117
    %p119 = scmp.ne.s32.totalorder %s110, %s111
    %p120 = scmp.eq.s32.totalorder %s16, 0
    %p121 = por %p119, %p120
    %p122 = scmp.ne.s32.totalorder %s110, %s111
    %p123 = scmp.eq.s32.totalorder %s17, 1
    %p124 = por %p122, %p123
    %p126 = scmp.ne.s32.totalorder %s111, %s125
    %p127 = scmp.eq.s32.totalorder %s17, 0
    %p128 = por %p126, %p127
    %s129 = ssub.s32 %s11, %s18
    %p130 = scmp.eq.s32.totalorder %s129, 0
    %s132 = sadd.s32 %s131, 1
    %s133 = scalar_select %p130, %s131, %s132
    %p136 = pneg %p130
    %p137 = scmp.eq.s32.totalorder %s11, 1
    %p138 = por %p136, %p137
    %p139 = scmp.ne.s32.totalorder %s131, %s134
    %p140 = scmp.eq.s32.totalorder %s11, 0
    %p141 = por %p139, %p140
    %p142 = scmp.ne.s32.totalorder %s131, %s134
    %p143 = scmp.eq.s32.totalorder %s16, 1
    %p144 = por %p142, %p143
    %p145 = scmp.ne.s32.totalorder %s134, %s135
    %p146 = scmp.eq.s32.totalorder %s16, 0
    %p147 = por %p145, %p146
    %p148 = scmp.ne.s32.totalorder %s134, %s135
    %p149 = scmp.eq.s32.totalorder %s17, 1
    %p150 = por %p148, %p149
    %p152 = scmp.ne.s32.totalorder %s135, %s151
    %p153 = scmp.eq.s32.totalorder %s17, 0
    %p154 = por %p152, %p153
    %p155 = scmp.le.s32.totalorder 1, %s11
    %p156 = scmp.lt.s32.totalorder %s11, 3
    %p157 = pnand %p155, %p156
    %p158 = pneg %p157
    // Predicated region
    $region9: #{color_model_forward.1} parent=5 // pred_check
      _
    $region10: #{color_model_forward.1} parent=5 // pred_check_branch
      %160 = sbr.rel (%p157) target = $region12
    $region11: #{color_model_forward.1} parent=5 // pred_region
      %s161 = ssub.s32 %s11, 1
      // Predicated region
      $region13: #{color_model_forward.1} parent=11 // pred_check
        %p162 = pneg %p58
      $region14: #{color_model_forward.1} parent=11 // pred_check_branch
        %164 = sbr.rel (%p162) target = $region16
      $region15: #{color_model_forward.1} parent=11 // pred_region
        _
      $region16: #{color_model_forward.1} parent=11 // pred_fallthru
        _
      // Predicated region
      $region17: #{color_model_forward.1} parent=11 // pred_check
        %p165 = pneg %p79
      $region18: #{color_model_forward.1} parent=11 // pred_check_branch
        %167 = sbr.rel (%p165) target = $region20
      $region19: #{color_model_forward.1} parent=11 // pred_region
        _
      $region20: #{color_model_forward.1} parent=11 // pred_fallthru
        _
      // Predicated region
      $region21: #{color_model_forward.1} parent=11 // pred_check
        %p168 = pneg %p100
      $region22: #{color_model_forward.1} parent=11 // pred_check_branch
        %170 = sbr.rel (%p168) target = $region24
      $region23: #{color_model_forward.1} parent=11 // pred_region
        _
      $region24: #{color_model_forward.1} parent=11 // pred_fallthru
        _
      // Predicated region
      $region25: #{color_model_forward.1} parent=11 // pred_check
        %p171 = pneg %p121
      $region26: #{color_model_forward.1} parent=11 // pred_check_branch
        %173 = sbr.rel (%p171) target = $region28
      $region27: #{color_model_forward.1} parent=11 // pred_region
        _
      $region28: #{color_model_forward.1} parent=11 // pred_fallthru
        _
    $region12: #{color_model_forward.1} parent=5 // pred_fallthru
      _
    %p174 = scmp.lt.s32.totalorder %s11, 2
    // Predicated region
    $region29: #{color_model_forward.1} parent=5 // pred_check
      %p175 = pneg %p174
    $region30: #{color_model_forward.1} parent=5 // pred_check_branch
      %177 = sbr.rel (%p175) target = $region32
    $region31: #{color_model_forward.1} parent=5 // pred_region
      // Predicated region
      $region33: #{color_model_forward.1} parent=31 // pred_check
        %p178 = pneg %p31
      $region34: #{color_model_forward.1} parent=31 // pred_check_branch
        %180 = sbr.rel (%p178) target = $region36
      $region35: #{color_model_forward.1} parent=31 // pred_region
        %p181 = scmp.lt.s32.totalorder %s11, 1
        %s182 = scalar_select %p181, %s11, 1
        %s183 = smul.addr %s182, 3
        %s184 = smul.addr %s183, 4
        %s185 = scalar_lea.vmem %s0, %s184
      $region36: #{color_model_forward.1} parent=31 // pred_fallthru
        _
    $region32: #{color_model_forward.1} parent=5 // pred_fallthru
      _
    %p186 = scmp.le.s32.totalorder 1, %s11
    %p187 = scmp.lt.s32.totalorder %s11, 3
    %p188 = pnand %p186, %p187
    %p189 = pneg %p188
    // Predicated region
    $region37: #{color_model_forward.1} parent=5 // pred_check
      _
    $region38: #{color_model_forward.1} parent=5 // pred_check_branch
      %191 = sbr.rel (%p188) target = $region40
    $region39: #{color_model_forward.1} parent=5 // pred_region
      %s192 = ssub.s32 %s11, 1
      %p193 = scmp.lt.s32.totalorder %s16, 1
      %s194 = scalar_select %p193, %s16, 1
      %s195 = smul.addr %s194, 3
      %s196 = smul.addr %s195, 4
      %s197 = scalar_lea.vmem %s0, %s196
      %p198 = pneg %p37
      %p199 = pneg %p34
      %p200 = pneg %p58
      %p201 = pneg %p55
      %p202 = pneg %p79
      %p203 = pneg %p76
      %p204 = pneg %p100
      %p205 = pneg %p97
      %p206 = pneg %p121
      %p207 = pneg %p118
      %p208 = pneg %p147
      %p209 = pneg %p144
      %p210 = scmp.lt.s32.totalorder %s16, 1
      %s211 = scalar_select %p210, %s16, 1
      %s212 = smul.addr %s211, 2
      %s213 = scalar_lea.vmem %s5, %s212
      %p214 = scmp.lt.s32.totalorder %s16, 1
      %s215 = scalar_select %p214, %s16, 1
      %s216 = smul.addr %s215, 3
      %s217 = smul.addr %s216, 4
      %s218 = scalar_lea.vmem %s0, %s217
      %p219 = scmp.lt.s32.totalorder %s16, 1
      %s220 = scalar_select %p219, %s16, 1
      %s221 = smul.addr %s220, 2
      %s222 = scalar_lea.vmem %s5, %s221
      %v224 = vld [vmem:[%s218] sm:$0xf]
      %v225 = vld [vmem:[%s218 + $0x4] sm:$0xf]
      %v226 = vld [vmem:[%s218 + $0x8] sm:$0x1]
      %v227 = vld [vmem:[%s1] sm:$0xff]
      %v228 = vld [vmem:[%s1 + $0x8] sm:$0xff]
      %v229 = vld [vmem:[%s1 + $0x10] sm:$0xff]
      %v230 = vld [vmem:[%s1 + $0x18] sm:$0xff]
      %v231 = vld [vmem:[%s1 + $0x20] sm:$0xff]
      %v232 = vld [vmem:[%s1 + $0x28] sm:$0xff]
      %v233 = vld [vmem:[%s1 + $0x30] sm:$0xff]
      %v234 = vld [vmem:[%s1 + $0x38] sm:$0xff]
      %v235 = vld [vmem:[%s1 + $0x40] sm:$0xff]
      %v236 = vld [vmem:[%s1 + $0x48] sm:$0xff]
      %v237 = vld [vmem:[%s1 + $0x50] sm:$0xff]
      %v238 = vld [vmem:[%s1 + $0x58] sm:$0xff]
      %v239 = vld [vmem:[%s1 + $0x60] sm:$0xff]
      %v240 = vld [vmem:[%s1 + $0x68] sm:$0xff]
      %v241 = vld [vmem:[%s1 + $0x70] sm:$0xff]
      %v242 = vld [vmem:[%s1 + $0x78] sm:$0xff]
      %v243 = vld [vmem:[%s1 + $0x80] sm:$0xff]
      %v244 = vld [vmem:[%s1 + $0x88] sm:$0xff]
      %v245 = vld [vmem:[%s1 + $0x90] sm:$0xff]
      %v246 = vld [vmem:[%s1 + $0x98] sm:$0xff]
      %v247 = vld [vmem:[%s1 + $0xa0] sm:$0xff]
      %v248 = vld [vmem:[%s1 + $0xa8] sm:$0xff]
      %v249 = vld [vmem:[%s1 + $0xb0] sm:$0xff]
      %v250 = vld [vmem:[%s1 + $0xb8] sm:$0xff]
      %v251 = vld [vmem:[%s1 + $0xc0] sm:$0xff]
      %v252 = vld [vmem:[%s1 + $0xc8] sm:$0xff]
      %v253 = vld [vmem:[%s1 + $0xd0] sm:$0xff]
      %v254 = vld [vmem:[%s1 + $0xd8] sm:$0xff]
      %v255 = vld [vmem:[%s1 + $0xe0] sm:$0xff]
      %v256 = vld [vmem:[%s1 + $0xe8] sm:$0xff]
      %v257 = vld [vmem:[%s1 + $0xf0] sm:$0xff]
      %v258 = vld [vmem:[%s1 + $0xf8] sm:$0xff]
      %v259 = vld [vmem:[%s1 + $0x100] sm:$0xff]
      %v260 = vld [vmem:[%s1 + $0x108] sm:$0xff]
      %v261 = vld [vmem:[%s1 + $0x110] sm:$0xff]
      %v262 = vld [vmem:[%s1 + $0x118] sm:$0xff]
      %v263 = vld [vmem:[%s1 + $0x120] sm:$0xff]
      %v264 = vld [vmem:[%s1 + $0x128] sm:$0xff]
      %v265 = vld [vmem:[%s1 + $0x130] sm:$0xff]
      %v266 = vld [vmem:[%s1 + $0x138] sm:$0xff]
      %v267 = vld [vmem:[%s1 + $0x140] sm:$0xff]
      %v268 = vld [vmem:[%s1 + $0x148] sm:$0xff]
      %v269 = vld [vmem:[%s1 + $0x150] sm:$0xff]
      %v270 = vld [vmem:[%s1 + $0x158] sm:$0xff]
      %v271 = vld [vmem:[%s1 + $0x160] sm:$0xff]
      %v272 = vld [vmem:[%s1 + $0x168] sm:$0xff]
      %v273 = vld [vmem:[%s1 + $0x170] sm:$0xff]
      %v274 = vld [vmem:[%s1 + $0x178] sm:$0xff]
      %v275 = vld [vmem:[%s1 + $0x180] sm:$0x77]
      %v276 = vld [vmem:[%s1 + $0x188] sm:$0x77]
      %v277 = vld [vmem:[%s1 + $0x190] sm:$0x77]
      %v278 = vld [vmem:[%s1 + $0x198] sm:$0x77]
      %v279 = vld [vmem:[%s1 + $0x1a0] sm:$0x77]
      %v280 = vld [vmem:[%s1 + $0x1a8] sm:$0x77]
      %v281 = vld [vmem:[%s1 + $0x1b0] sm:$0x77]
      %v282 = vld [vmem:[%s1 + $0x1b8] sm:$0x77]
      %s283 = scalar_lea.vmem %s1, 448
      %v284 = vld [vmem:[%s283] sm:$0xff]
      %v285 = vld [vmem:[%s283 + $0x8] sm:$0xff]
      %v286 = vld [vmem:[%s283 + $0x10] sm:$0xff]
      %v287 = vld [vmem:[%s283 + $0x18] sm:$0xff]
      %v288 = vld [vmem:[%s283 + $0x20] sm:$0xff]
      %v289 = vld [vmem:[%s283 + $0x28] sm:$0xff]
      %v290 = vld [vmem:[%s283 + $0x30] sm:$0xff]
      %v291 = vld [vmem:[%s283 + $0x38] sm:$0xff]
      %v292 = vld [vmem:[%s283 + $0x40] sm:$0xff]
      %v293 = vld [vmem:[%s283 + $0x48] sm:$0xff]
      %v294 = vld [vmem:[%s283 + $0x50] sm:$0xff]
      %v295 = vld [vmem:[%s283 + $0x58] sm:$0xff]
      %v296 = vld [vmem:[%s283 + $0x60] sm:$0xff]
      %v297 = vld [vmem:[%s283 + $0x68] sm:$0xff]
      %v298 = vld [vmem:[%s283 + $0x70] sm:$0xff]
      %v299 = vld [vmem:[%s283 + $0x78] sm:$0xff]
      %v300 = vld [vmem:[%s283 + $0x80] sm:$0xff]
      %v301 = vld [vmem:[%s283 + $0x88] sm:$0xff]
      %v302 = vld [vmem:[%s283 + $0x90] sm:$0xff]
      %v303 = vld [vmem:[%s283 + $0x98] sm:$0xff]
      %v304 = vld [vmem:[%s283 + $0xa0] sm:$0xff]
      %v305 = vld [vmem:[%s283 + $0xa8] sm:$0xff]
      %v306 = vld [vmem:[%s283 + $0xb0] sm:$0xff]
      %v307 = vld [vmem:[%s283 + $0xb8] sm:$0xff]
      %v308 = vld [vmem:[%s283 + $0xc0] sm:$0xff]
      %v309 = vld [vmem:[%s283 + $0xc8] sm:$0xff]
      %v310 = vld [vmem:[%s283 + $0xd0] sm:$0xff]
      %v311 = vld [vmem:[%s283 + $0xd8] sm:$0xff]
      %v312 = vld [vmem:[%s283 + $0xe0] sm:$0xff]
      %v313 = vld [vmem:[%s283 + $0xe8] sm:$0xff]
      %v314 = vld [vmem:[%s283 + $0xf0] sm:$0xff]
      %v315 = vld [vmem:[%s283 + $0xf8] sm:$0xff]
      %v316 = vld [vmem:[%s283 + $0x100] sm:$0xff]
      %v317 = vld [vmem:[%s283 + $0x108] sm:$0xff]
      %v318 = vld [vmem:[%s283 + $0x110] sm:$0xff]
      %v319 = vld [vmem:[%s283 + $0x118] sm:$0xff]
      %v320 = vld [vmem:[%s283 + $0x120] sm:$0xff]
      %v321 = vld [vmem:[%s283 + $0x128] sm:$0xff]
      %v322 = vld [vmem:[%s283 + $0x130] sm:$0xff]
      %v323 = vld [vmem:[%s283 + $0x138] sm:$0xff]
      %v324 = vld [vmem:[%s283 + $0x140] sm:$0xff]
      %v325 = vld [vmem:[%s283 + $0x148] sm:$0xff]
      %v326 = vld [vmem:[%s283 + $0x150] sm:$0xff]
      %v327 = vld [vmem:[%s283 + $0x158] sm:$0xff]
      %v328 = vld [vmem:[%s283 + $0x160] sm:$0xff]
      %v329 = vld [vmem:[%s283 + $0x168] sm:$0xff]
      %v330 = vld [vmem:[%s283 + $0x170] sm:$0xff]
      %v331 = vld [vmem:[%s283 + $0x178] sm:$0xff]
      %v332 = vld [vmem:[%s283 + $0x180] sm:$0x77]
      %v333 = vld [vmem:[%s283 + $0x188] sm:$0x77]
      %v334 = vld [vmem:[%s283 + $0x190] sm:$0x77]
      %v335 = vld [vmem:[%s283 + $0x198] sm:$0x77]
      %v336 = vld [vmem:[%s283 + $0x1a0] sm:$0x77]
      %v337 = vld [vmem:[%s283 + $0x1a8] sm:$0x77]
      %v338 = vld [vmem:[%s283 + $0x1b0] sm:$0x77]
      %v339 = vld [vmem:[%s283 + $0x1b8] sm:$0x77]
      %v343 = vunpack.c.l.b16 %v224
      %v344 = vunpack.c.l.b16 %v225
      %v345 = vunpack.c.l.b16 %v226
      %v346 = vpack.c.b16 %v344, %v343
      %v347 = vpack.c.b16 %v345, %v345
      %vm348 = vsmask.f32 7424
      %v350 = vshrl.u32 %v346, 16
      %v352 = vshll.u32 %v346, 16
      %v354 = vrot.slane %v352, 1
      %v355 = vor.u32 %v350, %v354
      %v357 = vshll.u32 %v347, 16
      %v359 = vrot.slane %v357, 1
      %v360 = vsel %vm348, %v355, %v359
      %v417 = vunpack.c.l.b16 %v284
      %v418 = vunpack.c.h.b16 %v284
      %v419 = vunpack.c.l.b16 %v285
      %v420 = vunpack.c.h.b16 %v285
      %v421 = vunpack.c.l.b16 %v286
      %v422 = vunpack.c.h.b16 %v286
      %v423 = vunpack.c.l.b16 %v287
      %v424 = vunpack.c.h.b16 %v287
      %v425 = vunpack.c.l.b16 %v288
      %v426 = vunpack.c.h.b16 %v288
      %v427 = vunpack.c.l.b16 %v289
      %v428 = vunpack.c.h.b16 %v289
      %v429 = vunpack.c.l.b16 %v290
      %v430 = vunpack.c.h.b16 %v290
      %v431 = vunpack.c.l.b16 %v291
      %v432 = vunpack.c.h.b16 %v291
      %v433 = vunpack.c.l.b16 %v292
      %v434 = vunpack.c.h.b16 %v292
      %v435 = vunpack.c.l.b16 %v293
      %v436 = vunpack.c.h.b16 %v293
      %v437 = vunpack.c.l.b16 %v294
      %v438 = vunpack.c.h.b16 %v294
      %v439 = vunpack.c.l.b16 %v295
      %v440 = vunpack.c.h.b16 %v295
      %v441 = vunpack.c.l.b16 %v296
      %v442 = vunpack.c.h.b16 %v296
      %v443 = vunpack.c.l.b16 %v297
      %v444 = vunpack.c.h.b16 %v297
      %v445 = vunpack.c.l.b16 %v298
      %v446 = vunpack.c.h.b16 %v298
      %v447 = vunpack.c.l.b16 %v299
      %v448 = vunpack.c.h.b16 %v299
      %v449 = vunpack.c.l.b16 %v300
      %v450 = vunpack.c.h.b16 %v300
      %v451 = vunpack.c.l.b16 %v301
      %v452 = vunpack.c.h.b16 %v301
      %v453 = vunpack.c.l.b16 %v302
      %v454 = vunpack.c.h.b16 %v302
      %v455 = vunpack.c.l.b16 %v303
      %v456 = vunpack.c.h.b16 %v303
      %v457 = vunpack.c.l.b16 %v304
      %v458 = vunpack.c.h.b16 %v304
      %v459 = vunpack.c.l.b16 %v305
      %v460 = vunpack.c.h.b16 %v305
      %v461 = vunpack.c.l.b16 %v306
      %v462 = vunpack.c.h.b16 %v306
      %v463 = vunpack.c.l.b16 %v307
      %v464 = vunpack.c.h.b16 %v307
      %v465 = vunpack.c.l.b16 %v308
      %v466 = vunpack.c.h.b16 %v308
      %v467 = vunpack.c.l.b16 %v309
      %v468 = vunpack.c.h.b16 %v309
      %v469 = vunpack.c.l.b16 %v310
      %v470 = vunpack.c.h.b16 %v310
      %v471 = vunpack.c.l.b16 %v311
      %v472 = vunpack.c.h.b16 %v311
      %v473 = vunpack.c.l.b16 %v312
      %v474 = vunpack.c.h.b16 %v312
      %v475 = vunpack.c.l.b16 %v313
      %v476 = vunpack.c.h.b16 %v313
      %v477 = vunpack.c.l.b16 %v314
      %v478 = vunpack.c.h.b16 %v314
      %v479 = vunpack.c.l.b16 %v315
      %v480 = vunpack.c.h.b16 %v315
      %v481 = vunpack.c.l.b16 %v316
      %v482 = vunpack.c.h.b16 %v316
      %v483 = vunpack.c.l.b16 %v317
      %v484 = vunpack.c.h.b16 %v317
      %v485 = vunpack.c.l.b16 %v318
      %v486 = vunpack.c.h.b16 %v318
      %v487 = vunpack.c.l.b16 %v319
      %v488 = vunpack.c.h.b16 %v319
      %v489 = vunpack.c.l.b16 %v320
      %v490 = vunpack.c.h.b16 %v320
      %v491 = vunpack.c.l.b16 %v321
      %v492 = vunpack.c.h.b16 %v321
      %v493 = vunpack.c.l.b16 %v322
      %v494 = vunpack.c.h.b16 %v322
      %v495 = vunpack.c.l.b16 %v323
      %v496 = vunpack.c.h.b16 %v323
      %v497 = vunpack.c.l.b16 %v324
      %v498 = vunpack.c.h.b16 %v324
      %v499 = vunpack.c.l.b16 %v325
      %v500 = vunpack.c.h.b16 %v325
      %v501 = vunpack.c.l.b16 %v326
      %v502 = vunpack.c.h.b16 %v326
      %v503 = vunpack.c.l.b16 %v327
      %v504 = vunpack.c.h.b16 %v327
      %v505 = vunpack.c.l.b16 %v328
      %v506 = vunpack.c.h.b16 %v328
      %v507 = vunpack.c.l.b16 %v329
      %v508 = vunpack.c.h.b16 %v329
      %v509 = vunpack.c.l.b16 %v330
      %v510 = vunpack.c.h.b16 %v330
      %v511 = vunpack.c.l.b16 %v331
      %v512 = vunpack.c.h.b16 %v331
      %v513 = vunpack.c.l.b16 %v332
      %v514 = vunpack.c.h.b16 %v332
      %v515 = vunpack.c.l.b16 %v333
      %v516 = vunpack.c.h.b16 %v333
      %v517 = vunpack.c.l.b16 %v334
      %v518 = vunpack.c.h.b16 %v334
      %v519 = vunpack.c.l.b16 %v335
      %v520 = vunpack.c.h.b16 %v335
      %v521 = vunpack.c.l.b16 %v336
      %v522 = vunpack.c.h.b16 %v336
      %v523 = vunpack.c.l.b16 %v337
      %v524 = vunpack.c.h.b16 %v337
      %v525 = vunpack.c.l.b16 %v338
      %v526 = vunpack.c.h.b16 %v338
      %v527 = vunpack.c.l.b16 %v339
      %v528 = vunpack.c.h.b16 %v339
      %v529 = vpack.c.b16 %v433, %v417
      %v530 = vpack.c.b16 %v434, %v418
      %v531 = vpack.c.b16 %v435, %v419
      %v532 = vpack.c.b16 %v436, %v420
      %v533 = vpack.c.b16 %v437, %v421
      %v534 = vpack.c.b16 %v438, %v422
      %v535 = vpack.c.b16 %v439, %v423
      %v536 = vpack.c.b16 %v440, %v424
      %v537 = vpack.c.b16 %v441, %v425
      %v538 = vpack.c.b16 %v442, %v426
      %v539 = vpack.c.b16 %v443, %v427
      %v540 = vpack.c.b16 %v444, %v428
      %v541 = vpack.c.b16 %v445, %v429
      %v542 = vpack.c.b16 %v446, %v430
      %v543 = vpack.c.b16 %v447, %v431
      %v544 = vpack.c.b16 %v448, %v432
      %v545 = vpack.c.b16 %v465, %v449
      %v546 = vpack.c.b16 %v466, %v450
      %v547 = vpack.c.b16 %v467, %v451
      %v548 = vpack.c.b16 %v468, %v452
      %v549 = vpack.c.b16 %v469, %v453
      %v550 = vpack.c.b16 %v470, %v454
      %v551 = vpack.c.b16 %v471, %v455
      %v552 = vpack.c.b16 %v472, %v456
      %v553 = vpack.c.b16 %v473, %v457
      %v554 = vpack.c.b16 %v474, %v458
      %v555 = vpack.c.b16 %v475, %v459
      %v556 = vpack.c.b16 %v476, %v460
      %v557 = vpack.c.b16 %v477, %v461
      %v558 = vpack.c.b16 %v478, %v462
      %v559 = vpack.c.b16 %v479, %v463
      %v560 = vpack.c.b16 %v480, %v464
      %v561 = vpack.c.b16 %v497, %v481
      %v562 = vpack.c.b16 %v498, %v482
      %v563 = vpack.c.b16 %v499, %v483
      %v564 = vpack.c.b16 %v500, %v484
      %v565 = vpack.c.b16 %v501, %v485
      %v566 = vpack.c.b16 %v502, %v486
      %v567 = vpack.c.b16 %v503, %v487
      %v568 = vpack.c.b16 %v504, %v488
      %v569 = vpack.c.b16 %v505, %v489
      %v570 = vpack.c.b16 %v506, %v490
      %v571 = vpack.c.b16 %v507, %v491
      %v572 = vpack.c.b16 %v508, %v492
      %v573 = vpack.c.b16 %v509, %v493
      %v574 = vpack.c.b16 %v510, %v494
      %v575 = vpack.c.b16 %v511, %v495
      %v576 = vpack.c.b16 %v512, %v496
      %v577 = vpack.c.b16 %v513, %v513
      %v578 = vpack.c.b16 %v514, %v514
      %v579 = vpack.c.b16 %v515, %v515
      %v580 = vpack.c.b16 %v516, %v516
      %v581 = vpack.c.b16 %v517, %v517
      %v582 = vpack.c.b16 %v518, %v518
      %v583 = vpack.c.b16 %v519, %v519
      %v584 = vpack.c.b16 %v520, %v520
      %v585 = vpack.c.b16 %v521, %v521
      %v586 = vpack.c.b16 %v522, %v522
      %v587 = vpack.c.b16 %v523, %v523
      %v588 = vpack.c.b16 %v524, %v524
      %v589 = vpack.c.b16 %v525, %v525
      %v590 = vpack.c.b16 %v526, %v526
      %v591 = vpack.c.b16 %v527, %v527
      %v592 = vpack.c.b16 %v528, %v528
      %vm641 = vcmask 441344
      %v643 = vsel %vm641, %v360, 0
      %vm645 = vcmask 1042432
      %v647 = vsel %vm645, %v577, 0
      %v650 = vsel %vm645, %v578, 0
      %v653 = vsel %vm645, %v579, 0
      %v656 = vsel %vm645, %v580, 0
      %v659 = vsel %vm645, %v581, 0
      %v662 = vsel %vm645, %v582, 0
      %v665 = vsel %vm645, %v583, 0
      %v668 = vsel %vm645, %v584, 0
      %v671 = vsel %vm645, %v585, 0
      %v674 = vsel %vm645, %v586, 0
      %v677 = vsel %vm645, %v587, 0
      %v680 = vsel %vm645, %v588, 0
      %v683 = vsel %vm645, %v589, 0
      %v686 = vsel %vm645, %v590, 0
      %v689 = vsel %vm645, %v591, 0
      %v692 = vsel %vm645, %v592, 0
      %694 = vmatprep.subr.bf16.mxu0 %v530
      %695 = vmatpush1.bf16.msra.mxu0 %v529
      %696 = vmatprep.subr.bf16.mxu0 %v546
      %697 = vmatpush1.bf16.msra.mxu0 %v545
      %698 = vmatprep.subr.bf16.mxu0 %v562
      %699 = vmatpush1.bf16.msra.mxu0 %v561
      %700 = vmatprep.subr.bf16.mxu0 %v650
      %701 = vmatpush1.bf16.msra.mxu0 %v647
      %702 = vmatprep.subr.bf16.mxu0 0
      %703 = vmatpush1.bf16.msra.mxu0 0
      %704 = vmatprep.subr.bf16.mxu0 0
      %705 = vmatpush1.bf16.msra.mxu0 0
      %706 = vmatprep.subr.bf16.mxu0 0
      %707 = vmatpush1.bf16.msra.mxu0 0
      %708 = vmatprep.subr.bf16.mxu0 0
      %709 = vmatpush1.bf16.msra.mxu0 0
      %710 = vmatprep.subr.bf16.mxu0 0
      %711 = vmatpush1.bf16.msra.mxu0 0
      %712 = vmatprep.subr.bf16.mxu0 0
      %713 = vmatpush1.bf16.msra.mxu0 0
      %714 = vmatprep.subr.bf16.mxu0 0
      %715 = vmatpush1.bf16.msra.mxu0 0
      %716 = vmatprep.subr.bf16.mxu0 0
      %717 = vmatpush1.bf16.msra.mxu0 0
      %718 = vmatprep.subr.bf16.mxu0 0
      %719 = vmatpush1.bf16.msra.mxu0 0
      %720 = vmatprep.subr.bf16.mxu0 0
      %721 = vmatpush1.bf16.msra.mxu0 0
      %722 = vmatprep.subr.bf16.mxu0 0
      %723 = vmatpush1.bf16.msra.mxu0 0
      %724 = vmatprep.subr.bf16.mxu0 0
      %725 = vmatpush1.bf16.msra.mxu0 0
      %726 = vmatprep.mubr.bf16.mxu0 0
      %727 = vmatmul.mubr.bf16.gmra.mrb[0].mxu0 %v643
      %v728 = vpop.f32.mrb[0].mxu0
      %v729 = vadd.f32 0.0, %v728
      %v730 = vpop.f32.mrb[0].mxu0
      %v731 = vadd.f32 0.0, %v730
      %v732 = vpop.f32.mrb[0].mxu0
      %v733 = vadd.f32 0.0, %v732
      %v734 = vpop.f32.mrb[0].mxu0
      %v735 = vadd.f32 0.0, %v734
      %736 = vdwg.mxu0
      %737 = vmatprep.subr.bf16.mxu0 %v532
      %738 = vmatpush1.bf16.msra.mxu0 %v531
      %739 = vmatprep.subr.bf16.mxu0 %v548
      %740 = vmatpush1.bf16.msra.mxu0 %v547
      %741 = vmatprep.subr.bf16.mxu0 %v564
      %742 = vmatpush1.bf16.msra.mxu0 %v563
      %743 = vmatprep.subr.bf16.mxu0 %v656
      %744 = vmatpush1.bf16.msra.mxu0 %v653
      %745 = vmatprep.subr.bf16.mxu0 0
      %746 = vmatpush1.bf16.msra.mxu0 0
      %747 = vmatprep.subr.bf16.mxu0 0
      %748 = vmatpush1.bf16.msra.mxu0 0
      %749 = vmatprep.subr.bf16.mxu0 0
      %750 = vmatpush1.bf16.msra.mxu0 0
      %751 = vmatprep.subr.bf16.mxu0 0
      %752 = vmatpush1.bf16.msra.mxu0 0
      %753 = vmatprep.subr.bf16.mxu0 0
      %754 = vmatpush1.bf16.msra.mxu0 0
      %755 = vmatprep.subr.bf16.mxu0 0
      %756 = vmatpush1.bf16.msra.mxu0 0
      %757 = vmatprep.subr.bf16.mxu0 0
      %758 = vmatpush1.bf16.msra.mxu0 0
      %759 = vmatprep.subr.bf16.mxu0 0
      %760 = vmatpush1.bf16.msra.mxu0 0
      %761 = vmatprep.subr.bf16.mxu0 0
      %762 = vmatpush1.bf16.msra.mxu0 0
      %763 = vmatprep.subr.bf16.mxu0 0
      %764 = vmatpush1.bf16.msra.mxu0 0
      %765 = vmatprep.subr.bf16.mxu0 0
      %766 = vmatpush1.bf16.msra.mxu0 0
      %767 = vmatprep.subr.bf16.mxu0 0
      %768 = vmatpush1.bf16.msra.mxu0 0
      %769 = vmatprep.mubr.bf16.mxu0 0
      %770 = vmatmul.mubr.bf16.gmra.mrb[0].mxu0 %v643
      %v771 = vpop.f32.mrb[0].mxu0
      %v772 = vadd.f32 0.0, %v771
      %v773 = vpop.f32.mrb[0].mxu0
      %v774 = vadd.f32 0.0, %v773
      %v775 = vpop.f32.mrb[0].mxu0
      %v776 = vadd.f32 0.0, %v775
      %v777 = vpop.f32.mrb[0].mxu0
      %v778 = vadd.f32 0.0, %v777
      %779 = vdwg.mxu0
      %780 = vmatprep.subr.bf16.mxu0 %v534
      %781 = vmatpush1.bf16.msra.mxu0 %v533
      %782 = vmatprep.subr.bf16.mxu0 %v550
      %783 = vmatpush1.bf16.msra.mxu0 %v549
      %784 = vmatprep.subr.bf16.mxu0 %v566
      %785 = vmatpush1.bf16.msra.mxu0 %v565
      %786 = vmatprep.subr.bf16.mxu0 %v662
      %787 = vmatpush1.bf16.msra.mxu0 %v659
      %788 = vmatprep.subr.bf16.mxu0 0
      %789 = vmatpush1.bf16.msra.mxu0 0
      %790 = vmatprep.subr.bf16.mxu0 0
      %791 = vmatpush1.bf16.msra.mxu0 0
      %792 = vmatprep.subr.bf16.mxu0 0
      %793 = vmatpush1.bf16.msra.mxu0 0
      %794 = vmatprep.subr.bf16.mxu0 0
      %795 = vmatpush1.bf16.msra.mxu0 0
      %796 = vmatprep.subr.bf16.mxu0 0
      %797 = vmatpush1.bf16.msra.mxu0 0
      %798 = vmatprep.subr.bf16.mxu0 0
      %799 = vmatpush1.bf16.msra.mxu0 0
      %800 = vmatprep.subr.bf16.mxu0 0
      %801 = vmatpush1.bf16.msra.mxu0 0
      %802 = vmatprep.subr.bf16.mxu0 0
      %803 = vmatpush1.bf16.msra.mxu0 0
      %804 = vmatprep.subr.bf16.mxu0 0
      %805 = vmatpush1.bf16.msra.mxu0 0
      %806 = vmatprep.subr.bf16.mxu0 0
      %807 = vmatpush1.bf16.msra.mxu0 0
      %808 = vmatprep.subr.bf16.mxu0 0
      %809 = vmatpush1.bf16.msra.mxu0 0
      %810 = vmatprep.subr.bf16.mxu0 0
      %811 = vmatpush1.bf16.msra.mxu0 0
      %812 = vmatprep.mubr.bf16.mxu0 0
      %813 = vmatmul.mubr.bf16.gmra.mrb[0].mxu0 %v643
      %v814 = vpop.f32.mrb[0].mxu0
      %v815 = vadd.f32 0.0, %v814
      %v816 = vpop.f32.mrb[0].mxu0
      %v817 = vadd.f32 0.0, %v816
      %v818 = vpop.f32.mrb[0].mxu0
      %v819 = vadd.f32 0.0, %v818
      %v820 = vpop.f32.mrb[0].mxu0
      %v821 = vadd.f32 0.0, %v820
      %822 = vdwg.mxu0
      %823 = vmatprep.subr.bf16.mxu0 %v536
      %824 = vmatpush1.bf16.msra.mxu0 %v535
      %825 = vmatprep.subr.bf16.mxu0 %v552
      %826 = vmatpush1.bf16.msra.mxu0 %v551
      %827 = vmatprep.subr.bf16.mxu0 %v568
      %828 = vmatpush1.bf16.msra.mxu0 %v567
      %829 = vmatprep.subr.bf16.mxu0 %v668
      %830 = vmatpush1.bf16.msra.mxu0 %v665
      %831 = vmatprep.subr.bf16.mxu0 0
      %832 = vmatpush1.bf16.msra.mxu0 0
      %833 = vmatprep.subr.bf16.mxu0 0
      %834 = vmatpush1.bf16.msra.mxu0 0
      %835 = vmatprep.subr.bf16.mxu0 0
      %836 = vmatpush1.bf16.msra.mxu0 0
      %837 = vmatprep.subr.bf16.mxu0 0
      %838 = vmatpush1.bf16.msra.mxu0 0
      %839 = vmatprep.subr.bf16.mxu0 0
      %840 = vmatpush1.bf16.msra.mxu0 0
      %841 = vmatprep.subr.bf16.mxu0 0
      %842 = vmatpush1.bf16.msra.mxu0 0
      %843 = vmatprep.subr.bf16.mxu0 0
      %844 = vmatpush1.bf16.msra.mxu0 0
      %845 = vmatprep.subr.bf16.mxu0 0
      %846 = vmatpush1.bf16.msra.mxu0 0
      %847 = vmatprep.subr.bf16.mxu0 0
      %848 = vmatpush1.bf16.msra.mxu0 0
      %849 = vmatprep.subr.bf16.mxu0 0
      %850 = vmatpush1.bf16.msra.mxu0 0
      %851 = vmatprep.subr.bf16.mxu0 0
      %852 = vmatpush1.bf16.msra.mxu0 0
      %853 = vmatprep.subr.bf16.mxu0 0
      %854 = vmatpush1.bf16.msra.mxu0 0
      %855 = vmatprep.mubr.bf16.mxu0 0
      %856 = vmatmul.mubr.bf16.gmra.mrb[0].mxu0 %v643
      %v857 = vpop.f32.mrb[0].mxu0
      %v858 = vadd.f32 0.0, %v857
      %v859 = vpop.f32.mrb[0].mxu0
      %v860 = vadd.f32 0.0, %v859
      %v861 = vpop.f32.mrb[0].mxu0
      %v862 = vadd.f32 0.0, %v861
      %v863 = vpop.f32.mrb[0].mxu0
      %v864 = vadd.f32 0.0, %v863
      %865 = vdwg.mxu0
      %866 = vmatprep.subr.bf16.mxu0 %v538
      %867 = vmatpush1.bf16.msra.mxu0 %v537
      %868 = vmatprep.subr.bf16.mxu0 %v554
      %869 = vmatpush1.bf16.msra.mxu0 %v553
      %870 = vmatprep.subr.bf16.mxu0 %v570
      %871 = vmatpush1.bf16.msra.mxu0 %v569
      %872 = vmatprep.subr.bf16.mxu0 %v674
      %873 = vmatpush1.bf16.msra.mxu0 %v671
      %874 = vmatprep.subr.bf16.mxu0 0
      %875 = vmatpush1.bf16.msra.mxu0 0
      %876 = vmatprep.subr.bf16.mxu0 0
      %877 = vmatpush1.bf16.msra.mxu0 0
      %878 = vmatprep.subr.bf16.mxu0 0
      %879 = vmatpush1.bf16.msra.mxu0 0
      %880 = vmatprep.subr.bf16.mxu0 0
      %881 = vmatpush1.bf16.msra.mxu0 0
      %882 = vmatprep.subr.bf16.mxu0 0
      %883 = vmatpush1.bf16.msra.mxu0 0
      %884 = vmatprep.subr.bf16.mxu0 0
      %885 = vmatpush1.bf16.msra.mxu0 0
      %886 = vmatprep.subr.bf16.mxu0 0
      %887 = vmatpush1.bf16.msra.mxu0 0
      %888 = vmatprep.subr.bf16.mxu0 0
      %889 = vmatpush1.bf16.msra.mxu0 0
      %890 = vmatprep.subr.bf16.mxu0 0
      %891 = vmatpush1.bf16.msra.mxu0 0
      %892 = vmatprep.subr.bf16.mxu0 0
      %893 = vmatpush1.bf16.msra.mxu0 0
      %894 = vmatprep.subr.bf16.mxu0 0
      %895 = vmatpush1.bf16.msra.mxu0 0
      %896 = vmatprep.subr.bf16.mxu0 0
      %897 = vmatpush1.bf16.msra.mxu0 0
      %898 = vmatprep.mubr.bf16.mxu0 0
      %899 = vmatmul.mubr.bf16.gmra.mrb[0].mxu0 %v643
      %v900 = vpop.f32.mrb[0].mxu0
      %v901 = vadd.f32 0.0, %v900
      %v902 = vpop.f32.mrb[0].mxu0
      %v903 = vadd.f32 0.0, %v902
      %v904 = vpop.f32.mrb[0].mxu0
      %v905 = vadd.f32 0.0, %v904
      %v906 = vpop.f32.mrb[0].mxu0
      %v907 = vadd.f32 0.0, %v906
      %908 = vdwg.mxu0
      %909 = vmatprep.subr.bf16.mxu0 %v540
      %910 = vmatpush1.bf16.msra.mxu0 %v539
      %911 = vmatprep.subr.bf16.mxu0 %v556
      %912 = vmatpush1.bf16.msra.mxu0 %v555
      %913 = vmatprep.subr.bf16.mxu0 %v572
      %914 = vmatpush1.bf16.msra.mxu0 %v571
      %915 = vmatprep.subr.bf16.mxu0 %v680
      %916 = vmatpush1.bf16.msra.mxu0 %v677
      %917 = vmatprep.subr.bf16.mxu0 0
      %918 = vmatpush1.bf16.msra.mxu0 0
      %919 = vmatprep.subr.bf16.mxu0 0
      %920 = vmatpush1.bf16.msra.mxu0 0
      %921 = vmatprep.subr.bf16.mxu0 0
      %922 = vmatpush1.bf16.msra.mxu0 0
      %923 = vmatprep.subr.bf16.mxu0 0
      %924 = vmatpush1.bf16.msra.mxu0 0
      %925 = vmatprep.subr.bf16.mxu0 0
      %926 = vmatpush1.bf16.msra.mxu0 0
      %927 = vmatprep.subr.bf16.mxu0 0
      %928 = vmatpush1.bf16.msra.mxu0 0
      %929 = vmatprep.subr.bf16.mxu0 0
      %930 = vmatpush1.bf16.msra.mxu0 0
      %931 = vmatprep.subr.bf16.mxu0 0
      %932 = vmatpush1.bf16.msra.mxu0 0
      %933 = vmatprep.subr.bf16.mxu0 0
      %934 = vmatpush1.bf16.msra.mxu0 0
      %935 = vmatprep.subr.bf16.mxu0 0
      %936 = vmatpush1.bf16.msra.mxu0 0
      %937 = vmatprep.subr.bf16.mxu0 0
      %938 = vmatpush1.bf16.msra.mxu0 0
      %939 = vmatprep.subr.bf16.mxu0 0
      %940 = vmatpush1.bf16.msra.mxu0 0
      %941 = vmatprep.mubr.bf16.mxu0 0
      %942 = vmatmul.mubr.bf16.gmra.mrb[0].mxu0 %v643
      %v943 = vpop.f32.mrb[0].mxu0
      %v944 = vadd.f32 0.0, %v943
      %v945 = vpop.f32.mrb[0].mxu0
      %v946 = vadd.f32 0.0, %v945
      %v947 = vpop.f32.mrb[0].mxu0
      %v948 = vadd.f32 0.0, %v947
      %v949 = vpop.f32.mrb[0].mxu0
      %v950 = vadd.f32 0.0, %v949
      %951 = vdwg.mxu0
      %952 = vmatprep.subr.bf16.mxu0 %v542
      %953 = vmatpush1.bf16.msra.mxu0 %v541
      %954 = vmatprep.subr.bf16.mxu0 %v558
      %955 = vmatpush1.bf16.msra.mxu0 %v557
      %956 = vmatprep.subr.bf16.mxu0 %v574
      %957 = vmatpush1.bf16.msra.mxu0 %v573
      %958 = vmatprep.subr.bf16.mxu0 %v686
      %959 = vmatpush1.bf16.msra.mxu0 %v683
      %960 = vmatprep.subr.bf16.mxu0 0
      %961 = vmatpush1.bf16.msra.mxu0 0
      %962 = vmatprep.subr.bf16.mxu0 0
      %963 = vmatpush1.bf16.msra.mxu0 0
      %964 = vmatprep.subr.bf16.mxu0 0
      %965 = vmatpush1.bf16.msra.mxu0 0
      %966 = vmatprep.subr.bf16.mxu0 0
      %967 = vmatpush1.bf16.msra.mxu0 0
      %968 = vmatprep.subr.bf16.mxu0 0
      %969 = vmatpush1.bf16.msra.mxu0 0
      %970 = vmatprep.subr.bf16.mxu0 0
      %971 = vmatpush1.bf16.msra.mxu0 0
      %972 = vmatprep.subr.bf16.mxu0 0
      %973 = vmatpush1.bf16.msra.mxu0 0
      %974 = vmatprep.subr.bf16.mxu0 0
      %975 = vmatpush1.bf16.msra.mxu0 0
      %976 = vmatprep.subr.bf16.mxu0 0
      %977 = vmatpush1.bf16.msra.mxu0 0
      %978 = vmatprep.subr.bf16.mxu0 0
      %979 = vmatpush1.bf16.msra.mxu0 0
      %980 = vmatprep.subr.bf16.mxu0 0
      %981 = vmatpush1.bf16.msra.mxu0 0
      %982 = vmatprep.subr.bf16.mxu0 0
      %983 = vmatpush1.bf16.msra.mxu0 0
      %984 = vmatprep.mubr.bf16.mxu0 0
      %985 = vmatmul.mubr.bf16.gmra.mrb[0].mxu0 %v643
      %v986 = vpop.f32.mrb[0].mxu0
      %v987 = vadd.f32 0.0, %v986
      %v988 = vpop.f32.mrb[0].mxu0
      %v989 = vadd.f32 0.0, %v988
      %v990 = vpop.f32.mrb[0].mxu0
      %v991 = vadd.f32 0.0, %v990
      %v992 = vpop.f32.mrb[0].mxu0
      %v993 = vadd.f32 0.0, %v992
      %994 = vdwg.mxu0
      %995 = vmatprep.subr.bf16.mxu0 %v544
      %996 = vmatpush1.bf16.msra.mxu0 %v543
      %997 = vmatprep.subr.bf16.mxu0 %v560
      %998 = vmatpush1.bf16.msra.mxu0 %v559
      %999 = vmatprep.subr.bf16.mxu0 %v576
      %1000 = vmatpush1.bf16.msra.mxu0 %v575
      %1001 = vmatprep.subr.bf16.mxu0 %v692
      %1002 = vmatpush1.bf16.msra.mxu0 %v689
      %1003 = vmatprep.subr.bf16.mxu0 0
      %1004 = vmatpush1.bf16.msra.mxu0 0
      %1005 = vmatprep.subr.bf16.mxu0 0
      %1006 = vmatpush1.bf16.msra.mxu0 0
      %1007 = vmatprep.subr.bf16.mxu0 0
      %1008 = vmatpush1.bf16.msra.mxu0 0
      %1009 = vmatprep.subr.bf16.mxu0 0
      %1010 = vmatpush1.bf16.msra.mxu0 0
      %1011 = vmatprep.subr.bf16.mxu0 0
      %1012 = vmatpush1.bf16.msra.mxu0 0
      %1013 = vmatprep.subr.bf16.mxu0 0
      %1014 = vmatpush1.bf16.msra.mxu0 0
      %1015 = vmatprep.subr.bf16.mxu0 0
      %1016 = vmatpush1.bf16.msra.mxu0 0
      %1017 = vmatprep.subr.bf16.mxu0 0
      %1018 = vmatpush1.bf16.msra.mxu0 0
      %1019 = vmatprep.subr.bf16.mxu0 0
      %1020 = vmatpush1.bf16.msra.mxu0 0
      %1021 = vmatprep.subr.bf16.mxu0 0
      %1022 = vmatpush1.bf16.msra.mxu0 0
      %1023 = vmatprep.subr.bf16.mxu0 0
      %1024 = vmatpush1.bf16.msra.mxu0 0
      %1025 = vmatprep.subr.bf16.mxu0 0
      %1026 = vmatpush1.bf16.msra.mxu0 0
      %1027 = vmatprep.mubr.bf16.mxu0 0
      %1028 = vmatmul.mubr.bf16.gmra.mrb[0].mxu0 %v643
      %v1029 = vpop.f32.mrb[0].mxu0
      %v1030 = vadd.f32 0.0, %v1029
      %v1031 = vpop.f32.mrb[0].mxu0
      %v1032 = vadd.f32 0.0, %v1031
      %v1033 = vpop.f32.mrb[0].mxu0
      %v1034 = vadd.f32 0.0, %v1033
      %v1035 = vpop.f32.mrb[0].mxu0
      %v1036 = vadd.f32 0.0, %v1035
      %1037 = vdwg.mxu0
      %v1094 = vunpack.c.l.b16 %v227
      %v1095 = vunpack.c.h.b16 %v227
      %v1096 = vunpack.c.l.b16 %v228
      %v1097 = vunpack.c.h.b16 %v228
      %v1098 = vunpack.c.l.b16 %v229
      %v1099 = vunpack.c.h.b16 %v229
      %v1100 = vunpack.c.l.b16 %v230
      %v1101 = vunpack.c.h.b16 %v230
      %v1102 = vunpack.c.l.b16 %v231
      %v1103 = vunpack.c.h.b16 %v231
      %v1104 = vunpack.c.l.b16 %v232
      %v1105 = vunpack.c.h.b16 %v232
      %v1106 = vunpack.c.l.b16 %v233
      %v1107 = vunpack.c.h.b16 %v233
      %v1108 = vunpack.c.l.b16 %v234
      %v1109 = vunpack.c.h.b16 %v234
      %v1110 = vunpack.c.l.b16 %v235
      %v1111 = vunpack.c.h.b16 %v235
      %v1112 = vunpack.c.l.b16 %v236
      %v1113 = vunpack.c.h.b16 %v236
      %v1114 = vunpack.c.l.b16 %v237
      %v1115 = vunpack.c.h.b16 %v237
      %v1116 = vunpack.c.l.b16 %v238
      %v1117 = vunpack.c.h.b16 %v238
      %v1118 = vunpack.c.l.b16 %v239
      %v1119 = vunpack.c.h.b16 %v239
      %v1120 = vunpack.c.l.b16 %v240
      %v1121 = vunpack.c.h.b16 %v240
      %v1122 = vunpack.c.l.b16 %v241
      %v1123 = vunpack.c.h.b16 %v241
      %v1124 = vunpack.c.l.b16 %v242
      %v1125 = vunpack.c.h.b16 %v242
      %v1126 = vunpack.c.l.b16 %v243
      %v1127 = vunpack.c.h.b16 %v243
      %v1128 = vunpack.c.l.b16 %v244
      %v1129 = vunpack.c.h.b16 %v244
      %v1130 = vunpack.c.l.b16 %v245
      %v1131 = vunpack.c.h.b16 %v245
      %v1132 = vunpack.c.l.b16 %v246
      %v1133 = vunpack.c.h.b16 %v246
      %v1134 = vunpack.c.l.b16 %v247
      %v1135 = vunpack.c.h.b16 %v247
      %v1136 = vunpack.c.l.b16 %v248
      %v1137 = vunpack.c.h.b16 %v248
      %v1138 = vunpack.c.l.b16 %v249
      %v1139 = vunpack.c.h.b16 %v249
      %v1140 = vunpack.c.l.b16 %v250
      %v1141 = vunpack.c.h.b16 %v250
      %v1142 = vunpack.c.l.b16 %v251
      %v1143 = vunpack.c.h.b16 %v251
      %v1144 = vunpack.c.l.b16 %v252
      %v1145 = vunpack.c.h.b16 %v252
      %v1146 = vunpack.c.l.b16 %v253
      %v1147 = vunpack.c.h.b16 %v253
      %v1148 = vunpack.c.l.b16 %v254
      %v1149 = vunpack.c.h.b16 %v254
      %v1150 = vunpack.c.l.b16 %v255
      %v1151 = vunpack.c.h.b16 %v255
      %v1152 = vunpack.c.l.b16 %v256
      %v1153 = vunpack.c.h.b16 %v256
      %v1154 = vunpack.c.l.b16 %v257
      %v1155 = vunpack.c.h.b16 %v257
      %v1156 = vunpack.c.l.b16 %v258
      %v1157 = vunpack.c.h.b16 %v258
      %v1158 = vunpack.c.l.b16 %v259
      %v1159 = vunpack.c.h.b16 %v259
      %v1160 = vunpack.c.l.b16 %v260
      %v1161 = vunpack.c.h.b16 %v260
      %v1162 = vunpack.c.l.b16 %v261
      %v1163 = vunpack.c.h.b16 %v261
      %v1164 = vunpack.c.l.b16 %v262
      %v1165 = vunpack.c.h.b16 %v262
      %v1166 = vunpack.c.l.b16 %v263
      %v1167 = vunpack.c.h.b16 %v263
      %v1168 = vunpack.c.l.b16 %v264
      %v1169 = vunpack.c.h.b16 %v264
      %v1170 = vunpack.c.l.b16 %v265
      %v1171 = vunpack.c.h.b16 %v265
      %v1172 = vunpack.c.l.b16 %v266
      %v1173 = vunpack.c.h.b16 %v266
      %v1174 = vunpack.c.l.b16 %v267
      %v1175 = vunpack.c.h.b16 %v267
      %v1176 = vunpack.c.l.b16 %v268
      %v1177 = vunpack.c.h.b16 %v268
      %v1178 = vunpack.c.l.b16 %v269
      %v1179 = vunpack.c.h.b16 %v269
      %v1180 = vunpack.c.l.b16 %v270
      %v1181 = vunpack.c.h.b16 %v270
      %v1182 = vunpack.c.l.b16 %v271
      %v1183 = vunpack.c.h.b16 %v271
      %v1184 = vunpack.c.l.b16 %v272
      %v1185 = vunpack.c.h.b16 %v272
      %v1186 = vunpack.c.l.b16 %v273
      %v1187 = vunpack.c.h.b16 %v273
      %v1188 = vunpack.c.l.b16 %v274
      %v1189 = vunpack.c.h.b16 %v274
      %v1190 = vunpack.c.l.b16 %v275
      %v1191 = vunpack.c.h.b16 %v275
      %v1192 = vunpack.c.l.b16 %v276
      %v1193 = vunpack.c.h.b16 %v276
      %v1194 = vunpack.c.l.b16 %v277
      %v1195 = vunpack.c.h.b16 %v277
      %v1196 = vunpack.c.l.b16 %v278
      %v1197 = vunpack.c.h.b16 %v278
      %v1198 = vunpack.c.l.b16 %v279
      %v1199 = vunpack.c.h.b16 %v279
      %v1200 = vunpack.c.l.b16 %v280
      %v1201 = vunpack.c.h.b16 %v280
      %v1202 = vunpack.c.l.b16 %v281
      %v1203 = vunpack.c.h.b16 %v281
      %v1204 = vunpack.c.l.b16 %v282
      %v1205 = vunpack.c.h.b16 %v282
      %v1206 = vpack.c.b16 %v1110, %v1094
      %v1207 = vpack.c.b16 %v1111, %v1095
      %v1208 = vpack.c.b16 %v1112, %v1096
      %v1209 = vpack.c.b16 %v1113, %v1097
      %v1210 = vpack.c.b16 %v1114, %v1098
      %v1211 = vpack.c.b16 %v1115, %v1099
      %v1212 = vpack.c.b16 %v1116, %v1100
      %v1213 = vpack.c.b16 %v1117, %v1101
      %v1214 = vpack.c.b16 %v1118, %v1102
      %v1215 = vpack.c.b16 %v1119, %v1103
      %v1216 = vpack.c.b16 %v1120, %v1104
      %v1217 = vpack.c.b16 %v1121, %v1105
      %v1218 = vpack.c.b16 %v1122, %v1106
      %v1219 = vpack.c.b16 %v1123, %v1107
      %v1220 = vpack.c.b16 %v1124, %v1108
      %v1221 = vpack.c.b16 %v1125, %v1109
      %v1222 = vpack.c.b16 %v1142, %v1126
      %v1223 = vpack.c.b16 %v1143, %v1127
      %v1224 = vpack.c.b16 %v1144, %v1128
      %v1225 = vpack.c.b16 %v1145, %v1129
      %v1226 = vpack.c.b16 %v1146, %v1130
      %v1227 = vpack.c.b16 %v1147, %v1131
      %v1228 = vpack.c.b16 %v1148, %v1132
      %v1229 = vpack.c.b16 %v1149, %v1133
      %v1230 = vpack.c.b16 %v1150, %v1134
      %v1231 = vpack.c.b16 %v1151, %v1135
      %v1232 = vpack.c.b16 %v1152, %v1136
      %v1233 = vpack.c.b16 %v1153, %v1137
      %v1234 = vpack.c.b16 %v1154, %v1138
      %v1235 = vpack.c.b16 %v1155, %v1139
      %v1236 = vpack.c.b16 %v1156, %v1140
      %v1237 = vpack.c.b16 %v1157, %v1141
      %v1238 = vpack.c.b16 %v1174, %v1158
      %v1239 = vpack.c.b16 %v1175, %v1159
      %v1240 = vpack.c.b16 %v1176, %v1160
      %v1241 = vpack.c.b16 %v1177, %v1161
      %v1242 = vpack.c.b16 %v1178, %v1162
      %v1243 = vpack.c.b16 %v1179, %v1163
      %v1244 = vpack.c.b16 %v1180, %v1164
      %v1245 = vpack.c.b16 %v1181, %v1165
      %v1246 = vpack.c.b16 %v1182, %v1166
      %v1247 = vpack.c.b16 %v1183, %v1167
      %v1248 = vpack.c.b16 %v1184, %v1168
      %v1249 = vpack.c.b16 %v1185, %v1169
      %v1250 = vpack.c.b16 %v1186, %v1170
      %v1251 = vpack.c.b16 %v1187, %v1171
      %v1252 = vpack.c.b16 %v1188, %v1172
      %v1253 = vpack.c.b16 %v1189, %v1173
      %v1254 = vpack.c.b16 %v1190, %v1190
      %v1255 = vpack.c.b16 %v1191, %v1191
      %v1256 = vpack.c.b16 %v1192, %v1192
      %v1257 = vpack.c.b16 %v1193, %v1193
      %v1258 = vpack.c.b16 %v1194, %v1194
      %v1259 = vpack.c.b16 %v1195, %v1195
      %v1260 = vpack.c.b16 %v1196, %v1196
      %v1261 = vpack.c.b16 %v1197, %v1197
      %v1262 = vpack.c.b16 %v1198, %v1198
      %v1263 = vpack.c.b16 %v1199, %v1199
      %v1264 = vpack.c.b16 %v1200, %v1200
      %v1265 = vpack.c.b16 %v1201, %v1201
      %v1266 = vpack.c.b16 %v1202, %v1202
      %v1267 = vpack.c.b16 %v1203, %v1203
      %v1268 = vpack.c.b16 %v1204, %v1204
      %v1269 = vpack.c.b16 %v1205, %v1205
      %v1318 = vsel %vm641, %v346, 0
      %v1321 = vsel %vm645, %v1254, 0
      %v1324 = vsel %vm645, %v1255, 0
      %v1327 = vsel %vm645, %v1256, 0
      %v1330 = vsel %vm645, %v1257, 0
      %v1333 = vsel %vm645, %v1258, 0
      %v1336 = vsel %vm645, %v1259, 0
      %v1339 = vsel %vm645, %v1260, 0
      %v1342 = vsel %vm645, %v1261, 0
      %v1345 = vsel %vm645, %v1262, 0
      %v1348 = vsel %vm645, %v1263, 0
      %v1351 = vsel %vm645, %v1264, 0
      %v1354 = vsel %vm645, %v1265, 0
      %v1357 = vsel %vm645, %v1266, 0
      %v1360 = vsel %vm645, %v1267, 0
      %v1363 = vsel %vm645, %v1268, 0
      %v1366 = vsel %vm645, %v1269, 0
      %1368 = vmatprep.subr.bf16.mxu0 %v1207
      %1369 = vmatpush1.bf16.msra.mxu0 %v1206
      %1370 = vmatprep.subr.bf16.mxu0 %v1223
      %1371 = vmatpush1.bf16.msra.mxu0 %v1222
      %1372 = vmatprep.subr.bf16.mxu0 %v1239
      %1373 = vmatpush1.bf16.msra.mxu0 %v1238
      %1374 = vmatprep.subr.bf16.mxu0 %v1324
      %1375 = vmatpush1.bf16.msra.mxu0 %v1321
      %1376 = vmatprep.subr.bf16.mxu0 0
      %1377 = vmatpush1.bf16.msra.mxu0 0
      %1378 = vmatprep.subr.bf16.mxu0 0
      %1379 = vmatpush1.bf16.msra.mxu0 0
      %1380 = vmatprep.subr.bf16.mxu0 0
      %1381 = vmatpush1.bf16.msra.mxu0 0
      %1382 = vmatprep.subr.bf16.mxu0 0
      %1383 = vmatpush1.bf16.msra.mxu0 0
      %1384 = vmatprep.subr.bf16.mxu0 0
      %1385 = vmatpush1.bf16.msra.mxu0 0
      %1386 = vmatprep.subr.bf16.mxu0 0
      %1387 = vmatpush1.bf16.msra.mxu0 0
      %1388 = vmatprep.subr.bf16.mxu0 0
      %1389 = vmatpush1.bf16.msra.mxu0 0
      %1390 = vmatprep.subr.bf16.mxu0 0
      %1391 = vmatpush1.bf16.msra.mxu0 0
      %1392 = vmatprep.subr.bf16.mxu0 0
      %1393 = vmatpush1.bf16.msra.mxu0 0
      %1394 = vmatprep.subr.bf16.mxu0 0
      %1395 = vmatpush1.bf16.msra.mxu0 0
      %1396 = vmatprep.subr.bf16.mxu0 0
      %1397 = vmatpush1.bf16.msra.mxu0 0
      %1398 = vmatprep.subr.bf16.mxu0 0
      %1399 = vmatpush1.bf16.msra.mxu0 0
      %1400 = vmatprep.mubr.bf16.mxu0 0
      %1401 = vmatmul.mubr.bf16.gmra.mrb[0].mxu0 %v1318
      %v1402 = vpop.f32.mrb[0].mxu0
      %v1403 = vadd.f32 %v729, %v1402
      %v1404 = vpop.f32.mrb[0].mxu0
      %v1405 = vadd.f32 %v731, %v1404
      %v1406 = vpop.f32.mrb[0].mxu0
      %v1407 = vadd.f32 %v733, %v1406
      %v1408 = vpop.f32.mrb[0].mxu0
      %v1409 = vadd.f32 %v735, %v1408
      %1410 = vdwg.mxu0
      %1411 = vmatprep.subr.bf16.mxu0 %v1209
      %1412 = vmatpush1.bf16.msra.mxu0 %v1208
      %1413 = vmatprep.subr.bf16.mxu0 %v1225
      %1414 = vmatpush1.bf16.msra.mxu0 %v1224
      %1415 = vmatprep.subr.bf16.mxu0 %v1241
      %1416 = vmatpush1.bf16.msra.mxu0 %v1240
      %1417 = vmatprep.subr.bf16.mxu0 %v1330
      %1418 = vmatpush1.bf16.msra.mxu0 %v1327
      %1419 = vmatprep.subr.bf16.mxu0 0
      %1420 = vmatpush1.bf16.msra.mxu0 0
      %1421 = vmatprep.subr.bf16.mxu0 0
      %1422 = vmatpush1.bf16.msra.mxu0 0
      %1423 = vmatprep.subr.bf16.mxu0 0
      %1424 = vmatpush1.bf16.msra.mxu0 0
      %1425 = vmatprep.subr.bf16.mxu0 0
      %1426 = vmatpush1.bf16.msra.mxu0 0
      %1427 = vmatprep.subr.bf16.mxu0 0
      %1428 = vmatpush1.bf16.msra.mxu0 0
      %1429 = vmatprep.subr.bf16.mxu0 0
      %1430 = vmatpush1.bf16.msra.mxu0 0
      %1431 = vmatprep.subr.bf16.mxu0 0
      %1432 = vmatpush1.bf16.msra.mxu0 0
      %1433 = vmatprep.subr.bf16.mxu0 0
      %1434 = vmatpush1.bf16.msra.mxu0 0
      %1435 = vmatprep.subr.bf16.mxu0 0
      %1436 = vmatpush1.bf16.msra.mxu0 0
      %1437 = vmatprep.subr.bf16.mxu0 0
      %1438 = vmatpush1.bf16.msra.mxu0 0
      %1439 = vmatprep.subr.bf16.mxu0 0
      %1440 = vmatpush1.bf16.msra.mxu0 0
      %1441 = vmatprep.subr.bf16.mxu0 0
      %1442 = vmatpush1.bf16.msra.mxu0 0
      %1443 = vmatprep.mubr.bf16.mxu0 0
      %1444 = vmatmul.mubr.bf16.gmra.mrb[0].mxu0 %v1318
      %v1445 = vpop.f32.mrb[0].mxu0
      %v1446 = vadd.f32 %v772, %v1445
      %v1447 = vpop.f32.mrb[0].mxu0
      %v1448 = vadd.f32 %v774, %v1447
      %v1449 = vpop.f32.mrb[0].mxu0
      %v1450 = vadd.f32 %v776, %v1449
      %v1451 = vpop.f32.mrb[0].mxu0
      %v1452 = vadd.f32 %v778, %v1451
      %1453 = vdwg.mxu0
      %1454 = vmatprep.subr.bf16.mxu0 %v1211
      %1455 = vmatpush1.bf16.msra.mxu0 %v1210
      %1456 = vmatprep.subr.bf16.mxu0 %v1227
      %1457 = vmatpush1.bf16.msra.mxu0 %v1226
      %1458 = vmatprep.subr.bf16.mxu0 %v1243
      %1459 = vmatpush1.bf16.msra.mxu0 %v1242
      %1460 = vmatprep.subr.bf16.mxu0 %v1336
      %1461 = vmatpush1.bf16.msra.mxu0 %v1333
      %1462 = vmatprep.subr.bf16.mxu0 0
      %1463 = vmatpush1.bf16.msra.mxu0 0
      %1464 = vmatprep.subr.bf16.mxu0 0
      %1465 = vmatpush1.bf16.msra.mxu0 0
      %1466 = vmatprep.subr.bf16.mxu0 0
      %1467 = vmatpush1.bf16.msra.mxu0 0
      %1468 = vmatprep.subr.bf16.mxu0 0
      %1469 = vmatpush1.bf16.msra.mxu0 0
      %1470 = vmatprep.subr.bf16.mxu0 0
      %1471 = vmatpush1.bf16.msra.mxu0 0
      %1472 = vmatprep.subr.bf16.mxu0 0
      %1473 = vmatpush1.bf16.msra.mxu0 0
      %1474 = vmatprep.subr.bf16.mxu0 0
      %1475 = vmatpush1.bf16.msra.mxu0 0
      %1476 = vmatprep.subr.bf16.mxu0 0
      %1477 = vmatpush1.bf16.msra.mxu0 0
      %1478 = vmatprep.subr.bf16.mxu0 0
      %1479 = vmatpush1.bf16.msra.mxu0 0
      %1480 = vmatprep.subr.bf16.mxu0 0
      %1481 = vmatpush1.bf16.msra.mxu0 0
      %1482 = vmatprep.subr.bf16.mxu0 0
      %1483 = vmatpush1.bf16.msra.mxu0 0
      %1484 = vmatprep.subr.bf16.mxu0 0
      %1485 = vmatpush1.bf16.msra.mxu0 0
      %1486 = vmatprep.mubr.bf16.mxu0 0
      %1487 = vmatmul.mubr.bf16.gmra.mrb[0].mxu0 %v1318
      %v1488 = vpop.f32.mrb[0].mxu0
      %v1489 = vadd.f32 %v815, %v1488
      %v1490 = vpop.f32.mrb[0].mxu0
      %v1491 = vadd.f32 %v817, %v1490
      %v1492 = vpop.f32.mrb[0].mxu0
      %v1493 = vadd.f32 %v819, %v1492
      %v1494 = vpop.f32.mrb[0].mxu0
      %v1495 = vadd.f32 %v821, %v1494
      %1496 = vdwg.mxu0
      %1497 = vmatprep.subr.bf16.mxu0 %v1213
      %1498 = vmatpush1.bf16.msra.mxu0 %v1212
      %1499 = vmatprep.subr.bf16.mxu0 %v1229
      %1500 = vmatpush1.bf16.msra.mxu0 %v1228
      %1501 = vmatprep.subr.bf16.mxu0 %v1245
      %1502 = vmatpush1.bf16.msra.mxu0 %v1244
      %1503 = vmatprep.subr.bf16.mxu0 %v1342
      %1504 = vmatpush1.bf16.msra.mxu0 %v1339
      %1505 = vmatprep.subr.bf16.mxu0 0
      %1506 = vmatpush1.bf16.msra.mxu0 0
      %1507 = vmatprep.subr.bf16.mxu0 0
      %1508 = vmatpush1.bf16.msra.mxu0 0
      %1509 = vmatprep.subr.bf16.mxu0 0
      %1510 = vmatpush1.bf16.msra.mxu0 0
      %1511 = vmatprep.subr.bf16.mxu0 0
      %1512 = vmatpush1.bf16.msra.mxu0 0
      %1513 = vmatprep.subr.bf16.mxu0 0
      %1514 = vmatpush1.bf16.msra.mxu0 0
      %1515 = vmatprep.subr.bf16.mxu0 0
      %1516 = vmatpush1.bf16.msra.mxu0 0
      %1517 = vmatprep.subr.bf16.mxu0 0
      %1518 = vmatpush1.bf16.msra.mxu0 0
      %1519 = vmatprep.subr.bf16.mxu0 0
      %1520 = vmatpush1.bf16.msra.mxu0 0
      %1521 = vmatprep.subr.bf16.mxu0 0
      %1522 = vmatpush1.bf16.msra.mxu0 0
      %1523 = vmatprep.subr.bf16.mxu0 0
      %1524 = vmatpush1.bf16.msra.mxu0 0
      %1525 = vmatprep.subr.bf16.mxu0 0
      %1526 = vmatpush1.bf16.msra.mxu0 0
      %1527 = vmatprep.subr.bf16.mxu0 0
      %1528 = vmatpush1.bf16.msra.mxu0 0
      %1529 = vmatprep.mubr.bf16.mxu0 0
      %1530 = vmatmul.mubr.bf16.gmra.mrb[0].mxu0 %v1318
      %v1531 = vpop.f32.mrb[0].mxu0
      %v1532 = vadd.f32 %v858, %v1531
      %v1533 = vpop.f32.mrb[0].mxu0
      %v1534 = vadd.f32 %v860, %v1533
      %v1535 = vpop.f32.mrb[0].mxu0
      %v1536 = vadd.f32 %v862, %v1535
      %v1537 = vpop.f32.mrb[0].mxu0
      %v1538 = vadd.f32 %v864, %v1537
      %1539 = vdwg.mxu0
      %1540 = vmatprep.subr.bf16.mxu0 %v1215
      %1541 = vmatpush1.bf16.msra.mxu0 %v1214
      %1542 = vmatprep.subr.bf16.mxu0 %v1231
      %1543 = vmatpush1.bf16.msra.mxu0 %v1230
      %1544 = vmatprep.subr.bf16.mxu0 %v1247
      %1545 = vmatpush1.bf16.msra.mxu0 %v1246
      %1546 = vmatprep.subr.bf16.mxu0 %v1348
      %1547 = vmatpush1.bf16.msra.mxu0 %v1345
      %1548 = vmatprep.subr.bf16.mxu0 0
      %1549 = vmatpush1.bf16.msra.mxu0 0
      %1550 = vmatprep.subr.bf16.mxu0 0
      %1551 = vmatpush1.bf16.msra.mxu0 0
      %1552 = vmatprep.subr.bf16.mxu0 0
      %1553 = vmatpush1.bf16.msra.mxu0 0
      %1554 = vmatprep.subr.bf16.mxu0 0
      %1555 = vmatpush1.bf16.msra.mxu0 0
      %1556 = vmatprep.subr.bf16.mxu0 0
      %1557 = vmatpush1.bf16.msra.mxu0 0
      %1558 = vmatprep.subr.bf16.mxu0 0
      %1559 = vmatpush1.bf16.msra.mxu0 0
      %1560 = vmatprep.subr.bf16.mxu0 0
      %1561 = vmatpush1.bf16.msra.mxu0 0
      %1562 = vmatprep.subr.bf16.mxu0 0
      %1563 = vmatpush1.bf16.msra.mxu0 0
      %1564 = vmatprep.subr.bf16.mxu0 0
      %1565 = vmatpush1.bf16.msra.mxu0 0
      %1566 = vmatprep.subr.bf16.mxu0 0
      %1567 = vmatpush1.bf16.msra.mxu0 0
      %1568 = vmatprep.subr.bf16.mxu0 0
      %1569 = vmatpush1.bf16.msra.mxu0 0
      %1570 = vmatprep.subr.bf16.mxu0 0
      %1571 = vmatpush1.bf16.msra.mxu0 0
      %1572 = vmatprep.mubr.bf16.mxu0 0
      %1573 = vmatmul.mubr.bf16.gmra.mrb[0].mxu0 %v1318
      %v1574 = vpop.f32.mrb[0].mxu0
      %v1575 = vadd.f32 %v901, %v1574
      %v1576 = vpop.f32.mrb[0].mxu0
      %v1577 = vadd.f32 %v903, %v1576
      %v1578 = vpop.f32.mrb[0].mxu0
      %v1579 = vadd.f32 %v905, %v1578
      %v1580 = vpop.f32.mrb[0].mxu0
      %v1581 = vadd.f32 %v907, %v1580
      %1582 = vdwg.mxu0
      %1583 = vmatprep.subr.bf16.mxu0 %v1217
      %1584 = vmatpush1.bf16.msra.mxu0 %v1216
      %1585 = vmatprep.subr.bf16.mxu0 %v1233
      %1586 = vmatpush1.bf16.msra.mxu0 %v1232
      %1587 = vmatprep.subr.bf16.mxu0 %v1249
      %1588 = vmatpush1.bf16.msra.mxu0 %v1248
      %1589 = vmatprep.subr.bf16.mxu0 %v1354
      %1590 = vmatpush1.bf16.msra.mxu0 %v1351
      %1591 = vmatprep.subr.bf16.mxu0 0
      %1592 = vmatpush1.bf16.msra.mxu0 0
      %1593 = vmatprep.subr.bf16.mxu0 0
      %1594 = vmatpush1.bf16.msra.mxu0 0
      %1595 = vmatprep.subr.bf16.mxu0 0
      %1596 = vmatpush1.bf16.msra.mxu0 0
      %1597 = vmatprep.subr.bf16.mxu0 0
      %1598 = vmatpush1.bf16.msra.mxu0 0
      %1599 = vmatprep.subr.bf16.mxu0 0
      %1600 = vmatpush1.bf16.msra.mxu0 0
      %1601 = vmatprep.subr.bf16.mxu0 0
      %1602 = vmatpush1.bf16.msra.mxu0 0
      %1603 = vmatprep.subr.bf16.mxu0 0
      %1604 = vmatpush1.bf16.msra.mxu0 0
      %1605 = vmatprep.subr.bf16.mxu0 0
      %1606 = vmatpush1.bf16.msra.mxu0 0
      %1607 = vmatprep.subr.bf16.mxu0 0
      %1608 = vmatpush1.bf16.msra.mxu0 0
      %1609 = vmatprep.subr.bf16.mxu0 0
      %1610 = vmatpush1.bf16.msra.mxu0 0
      %1611 = vmatprep.subr.bf16.mxu0 0
      %1612 = vmatpush1.bf16.msra.mxu0 0
      %1613 = vmatprep.subr.bf16.mxu0 0
      %1614 = vmatpush1.bf16.msra.mxu0 0
      %1615 = vmatprep.mubr.bf16.mxu0 0
      %1616 = vmatmul.mubr.bf16.gmra.mrb[0].mxu0 %v1318
      %v1617 = vpop.f32.mrb[0].mxu0
      %v1618 = vadd.f32 %v944, %v1617
      %v1619 = vpop.f32.mrb[0].mxu0
      %v1620 = vadd.f32 %v946, %v1619
      %v1621 = vpop.f32.mrb[0].mxu0
      %v1622 = vadd.f32 %v948, %v1621
      %v1623 = vpop.f32.mrb[0].mxu0
      %v1624 = vadd.f32 %v950, %v1623
      %1625 = vdwg.mxu0
      %1626 = vmatprep.subr.bf16.mxu0 %v1219
      %1627 = vmatpush1.bf16.msra.mxu0 %v1218
      %1628 = vmatprep.subr.bf16.mxu0 %v1235
      %1629 = vmatpush1.bf16.msra.mxu0 %v1234
      %1630 = vmatprep.subr.bf16.mxu0 %v1251
      %1631 = vmatpush1.bf16.msra.mxu0 %v1250
      %1632 = vmatprep.subr.bf16.mxu0 %v1360
      %1633 = vmatpush1.bf16.msra.mxu0 %v1357
      %1634 = vmatprep.subr.bf16.mxu0 0
      %1635 = vmatpush1.bf16.msra.mxu0 0
      %1636 = vmatprep.subr.bf16.mxu0 0
      %1637 = vmatpush1.bf16.msra.mxu0 0
      %1638 = vmatprep.subr.bf16.mxu0 0
      %1639 = vmatpush1.bf16.msra.mxu0 0
      %1640 = vmatprep.subr.bf16.mxu0 0
      %1641 = vmatpush1.bf16.msra.mxu0 0
      %1642 = vmatprep.subr.bf16.mxu0 0
      %1643 = vmatpush1.bf16.msra.mxu0 0
      %1644 = vmatprep.subr.bf16.mxu0 0
      %1645 = vmatpush1.bf16.msra.mxu0 0
      %1646 = vmatprep.subr.bf16.mxu0 0
      %1647 = vmatpush1.bf16.msra.mxu0 0
      %1648 = vmatprep.subr.bf16.mxu0 0
      %1649 = vmatpush1.bf16.msra.mxu0 0
      %1650 = vmatprep.subr.bf16.mxu0 0
      %1651 = vmatpush1.bf16.msra.mxu0 0
      %1652 = vmatprep.subr.bf16.mxu0 0
      %1653 = vmatpush1.bf16.msra.mxu0 0
      %1654 = vmatprep.subr.bf16.mxu0 0
      %1655 = vmatpush1.bf16.msra.mxu0 0
      %1656 = vmatprep.subr.bf16.mxu0 0
      %1657 = vmatpush1.bf16.msra.mxu0 0
      %1658 = vmatprep.mubr.bf16.mxu0 0
      %1659 = vmatmul.mubr.bf16.gmra.mrb[0].mxu0 %v1318
      %v1660 = vpop.f32.mrb[0].mxu0
      %v1661 = vadd.f32 %v987, %v1660
      %v1662 = vpop.f32.mrb[0].mxu0
      %v1663 = vadd.f32 %v989, %v1662
      %v1664 = vpop.f32.mrb[0].mxu0
      %v1665 = vadd.f32 %v991, %v1664
      %v1666 = vpop.f32.mrb[0].mxu0
      %v1667 = vadd.f32 %v993, %v1666
      %1668 = vdwg.mxu0
      %1669 = vmatprep.subr.bf16.mxu0 %v1221
      %1670 = vmatpush1.bf16.msra.mxu0 %v1220
      %1671 = vmatprep.subr.bf16.mxu0 %v1237
      %1672 = vmatpush1.bf16.msra.mxu0 %v1236
      %1673 = vmatprep.subr.bf16.mxu0 %v1253
      %1674 = vmatpush1.bf16.msra.mxu0 %v1252
      %1675 = vmatprep.subr.bf16.mxu0 %v1366
      %1676 = vmatpush1.bf16.msra.mxu0 %v1363
      %1677 = vmatprep.subr.bf16.mxu0 0
      %1678 = vmatpush1.bf16.msra.mxu0 0
      %1679 = vmatprep.subr.bf16.mxu0 0
      %1680 = vmatpush1.bf16.msra.mxu0 0
      %1681 = vmatprep.subr.bf16.mxu0 0
      %1682 = vmatpush1.bf16.msra.mxu0 0
      %1683 = vmatprep.subr.bf16.mxu0 0
      %1684 = vmatpush1.bf16.msra.mxu0 0
      %1685 = vmatprep.subr.bf16.mxu0 0
      %1686 = vmatpush1.bf16.msra.mxu0 0
      %1687 = vmatprep.subr.bf16.mxu0 0
      %1688 = vmatpush1.bf16.msra.mxu0 0
      %1689 = vmatprep.subr.bf16.mxu0 0
      %1690 = vmatpush1.bf16.msra.mxu0 0
      %1691 = vmatprep.subr.bf16.mxu0 0
      %1692 = vmatpush1.bf16.msra.mxu0 0
      %1693 = vmatprep.subr.bf16.mxu0 0
      %1694 = vmatpush1.bf16.msra.mxu0 0
      %1695 = vmatprep.subr.bf16.mxu0 0
      %1696 = vmatpush1.bf16.msra.mxu0 0
      %1697 = vmatprep.subr.bf16.mxu0 0
      %1698 = vmatpush1.bf16.msra.mxu0 0
      %1699 = vmatprep.subr.bf16.mxu0 0
      %1700 = vmatpush1.bf16.msra.mxu0 0
      %1701 = vmatprep.mubr.bf16.mxu0 0
      %1702 = vmatmul.mubr.bf16.gmra.mrb[0].mxu0 %v1318
      %v1703 = vpop.f32.mrb[0].mxu0
      %v1704 = vadd.f32 %v1030, %v1703
      %v1705 = vpop.f32.mrb[0].mxu0
      %v1706 = vadd.f32 %v1032, %v1705
      %v1707 = vpop.f32.mrb[0].mxu0
      %v1708 = vadd.f32 %v1034, %v1707
      %v1709 = vpop.f32.mrb[0].mxu0
      %v1710 = vadd.f32 %v1036, %v1709
      %1711 = vdwg.mxu0
      %s1712 = scalar_lea.vmem %s1, 896
      %v1713 = vld [vmem:[%s1712] sm:$0xff]
      %v1714 = vld [vmem:[%s1712 + $0x8] sm:$0xff]
      %v1715 = vld [vmem:[%s1712 + $0x10] sm:$0xff]
      %v1716 = vld [vmem:[%s1712 + $0x18] sm:$0xff]
      %v1717 = vld [vmem:[%s1712 + $0x20] sm:$0xff]
      %v1718 = vld [vmem:[%s1712 + $0x28] sm:$0xff]
      %v1719 = vld [vmem:[%s1712 + $0x30] sm:$0xff]
      %v1720 = vld [vmem:[%s1712 + $0x38] sm:$0xff]
      %v1721 = vld [vmem:[%s1712 + $0x40] sm:$0xff]
      %v1722 = vld [vmem:[%s1712 + $0x48] sm:$0xff]
      %v1723 = vld [vmem:[%s1712 + $0x50] sm:$0xff]
      %v1724 = vld [vmem:[%s1712 + $0x58] sm:$0xff]
      %v1725 = vld [vmem:[%s1712 + $0x60] sm:$0xff]
      %v1726 = vld [vmem:[%s1712 + $0x68] sm:$0xff]
      %v1727 = vld [vmem:[%s1712 + $0x70] sm:$0xff]
      %v1728 = vld [vmem:[%s1712 + $0x78] sm:$0xff]
      %v1729 = vld [vmem:[%s1712 + $0x80] sm:$0xff]
      %v1730 = vld [vmem:[%s1712 + $0x88] sm:$0xff]
      %v1731 = vld [vmem:[%s1712 + $0x90] sm:$0xff]
      %v1732 = vld [vmem:[%s1712 + $0x98] sm:$0xff]
      %v1733 = vld [vmem:[%s1712 + $0xa0] sm:$0xff]
      %v1734 = vld [vmem:[%s1712 + $0xa8] sm:$0xff]
      %v1735 = vld [vmem:[%s1712 + $0xb0] sm:$0xff]
      %v1736 = vld [vmem:[%s1712 + $0xb8] sm:$0xff]
      %v1737 = vld [vmem:[%s1712 + $0xc0] sm:$0xff]
      %v1738 = vld [vmem:[%s1712 + $0xc8] sm:$0xff]
      %v1739 = vld [vmem:[%s1712 + $0xd0] sm:$0xff]
      %v1740 = vld [vmem:[%s1712 + $0xd8] sm:$0xff]
      %v1741 = vld [vmem:[%s1712 + $0xe0] sm:$0xff]
      %v1742 = vld [vmem:[%s1712 + $0xe8] sm:$0xff]
      %v1743 = vld [vmem:[%s1712 + $0xf0] sm:$0xff]
      %v1744 = vld [vmem:[%s1712 + $0xf8] sm:$0xff]
      %v1745 = vld [vmem:[%s1712 + $0x100] sm:$0xff]
      %v1746 = vld [vmem:[%s1712 + $0x108] sm:$0xff]
      %v1747 = vld [vmem:[%s1712 + $0x110] sm:$0xff]
      %v1748 = vld [vmem:[%s1712 + $0x118] sm:$0xff]
      %v1749 = vld [vmem:[%s1712 + $0x120] sm:$0xff]
      %v1750 = vld [vmem:[%s1712 + $0x128] sm:$0xff]
      %v1751 = vld [vmem:[%s1712 + $0x130] sm:$0xff]
      %v1752 = vld [vmem:[%s1712 + $0x138] sm:$0xff]
      %v1753 = vld [vmem:[%s1712 + $0x140] sm:$0xff]
      %v1754 = vld [vmem:[%s1712 + $0x148] sm:$0xff]
      %v1755 = vld [vmem:[%s1712 + $0x150] sm:$0xff]
      %v1756 = vld [vmem:[%s1712 + $0x158] sm:$0xff]
      %v1757 = vld [vmem:[%s1712 + $0x160] sm:$0xff]
      %v1758 = vld [vmem:[%s1712 + $0x168] sm:$0xff]
      %v1759 = vld [vmem:[%s1712 + $0x170] sm:$0xff]
      %v1760 = vld [vmem:[%s1712 + $0x178] sm:$0xff]
      %v1761 = vld [vmem:[%s1712 + $0x180] sm:$0x77]
      %v1762 = vld [vmem:[%s1712 + $0x188] sm:$0x77]
      %v1763 = vld [vmem:[%s1712 + $0x190] sm:$0x77]
      %v1764 = vld [vmem:[%s1712 + $0x198] sm:$0x77]
      %v1765 = vld [vmem:[%s1712 + $0x1a0] sm:$0x77]
      %v1766 = vld [vmem:[%s1712 + $0x1a8] sm:$0x77]
      %v1767 = vld [vmem:[%s1712 + $0x1b0] sm:$0x77]
      %v1768 = vld [vmem:[%s1712 + $0x1b8] sm:$0x77]
      %vm1769 = vcmask 1046528
      %v1770 = vrot.slane %v346, 1
      %v1771 = vrot.slane %v347, 1
      %v1772 = vsel %vm1769, %v1770, %v1771
      %v1829 = vunpack.c.l.b16 %v1713
      %v1830 = vunpack.c.h.b16 %v1713
      %v1831 = vunpack.c.l.b16 %v1714
      %v1832 = vunpack.c.h.b16 %v1714
      %v1833 = vunpack.c.l.b16 %v1715
      %v1834 = vunpack.c.h.b16 %v1715
      %v1835 = vunpack.c.l.b16 %v1716
      %v1836 = vunpack.c.h.b16 %v1716
      %v1837 = vunpack.c.l.b16 %v1717
      %v1838 = vunpack.c.h.b16 %v1717
      %v1839 = vunpack.c.l.b16 %v1718
      %v1840 = vunpack.c.h.b16 %v1718
      %v1841 = vunpack.c.l.b16 %v1719
      %v1842 = vunpack.c.h.b16 %v1719
      %v1843 = vunpack.c.l.b16 %v1720
      %v1844 = vunpack.c.h.b16 %v1720
      %v1845 = vunpack.c.l.b16 %v1721
      %v1846 = vunpack.c.h.b16 %v1721
      %v1847 = vunpack.c.l.b16 %v1722
      %v1848 = vunpack.c.h.b16 %v1722
      %v1849 = vunpack.c.l.b16 %v1723
      %v1850 = vunpack.c.h.b16 %v1723
      %v1851 = vunpack.c.l.b16 %v1724
      %v1852 = vunpack.c.h.b16 %v1724
      %v1853 = vunpack.c.l.b16 %v1725
      %v1854 = vunpack.c.h.b16 %v1725
      %v1855 = vunpack.c.l.b16 %v1726
      %v1856 = vunpack.c.h.b16 %v1726
      %v1857 = vunpack.c.l.b16 %v1727
      %v1858 = vunpack.c.h.b16 %v1727
      %v1859 = vunpack.c.l.b16 %v1728
      %v1860 = vunpack.c.h.b16 %v1728
      %v1861 = vunpack.c.l.b16 %v1729
      %v1862 = vunpack.c.h.b16 %v1729
      %v1863 = vunpack.c.l.b16 %v1730
      %v1864 = vunpack.c.h.b16 %v1730
      %v1865 = vunpack.c.l.b16 %v1731
      %v1866 = vunpack.c.h.b16 %v1731
      %v1867 = vunpack.c.l.b16 %v1732
      %v1868 = vunpack.c.h.b16 %v1732
      %v1869 = vunpack.c.l.b16 %v1733
      %v1870 = vunpack.c.h.b16 %v1733
      %v1871 = vunpack.c.l.b16 %v1734
      %v1872 = vunpack.c.h.b16 %v1734
      %v1873 = vunpack.c.l.b16 %v1735
      %v1874 = vunpack.c.h.b16 %v1735
      %v1875 = vunpack.c.l.b16 %v1736
      %v1876 = vunpack.c.h.b16 %v1736
      %v1877 = vunpack.c.l.b16 %v1737
      %v1878 = vunpack.c.h.b16 %v1737
      %v1879 = vunpack.c.l.b16 %v1738
      %v1880 = vunpack.c.h.b16 %v1738
      %v1881 = vunpack.c.l.b16 %v1739
      %v1882 = vunpack.c.h.b16 %v1739
      %v1883 = vunpack.c.l.b16 %v1740
      %v1884 = vunpack.c.h.b16 %v1740
      %v1885 = vunpack.c.l.b16 %v1741
      %v1886 = vunpack.c.h.b16 %v1741
      %v1887 = vunpack.c.l.b16 %v1742
      %v1888 = vunpack.c.h.b16 %v1742
      %v1889 = vunpack.c.l.b16 %v1743
      %v1890 = vunpack.c.h.b16 %v1743
      %v1891 = vunpack.c.l.b16 %v1744
      %v1892 = vunpack.c.h.b16 %v1744
      %v1893 = vunpack.c.l.b16 %v1745
      %v1894 = vunpack.c.h.b16 %v1745
      %v1895 = vunpack.c.l.b16 %v1746
      %v1896 = vunpack.c.h.b16 %v1746
      %v1897 = vunpack.c.l.b16 %v1747
      %v1898 = vunpack.c.h.b16 %v1747
      %v1899 = vunpack.c.l.b16 %v1748
      %v1900 = vunpack.c.h.b16 %v1748
      %v1901 = vunpack.c.l.b16 %v1749
      %v1902 = vunpack.c.h.b16 %v1749
      %v1903 = vunpack.c.l.b16 %v1750
      %v1904 = vunpack.c.h.b16 %v1750
      %v1905 = vunpack.c.l.b16 %v1751
      %v1906 = vunpack.c.h.b16 %v1751
      %v1907 = vunpack.c.l.b16 %v1752
      %v1908 = vunpack.c.h.b16 %v1752
      %v1909 = vunpack.c.l.b16 %v1753
      %v1910 = vunpack.c.h.b16 %v1753
      %v1911 = vunpack.c.l.b16 %v1754
      %v1912 = vunpack.c.h.b16 %v1754
      %v1913 = vunpack.c.l.b16 %v1755
      %v1914 = vunpack.c.h.b16 %v1755
      %v1915 = vunpack.c.l.b16 %v1756
      %v1916 = vunpack.c.h.b16 %v1756
      %v1917 = vunpack.c.l.b16 %v1757
      %v1918 = vunpack.c.h.b16 %v1757
      %v1919 = vunpack.c.l.b16 %v1758
      %v1920 = vunpack.c.h.b16 %v1758
      %v1921 = vunpack.c.l.b16 %v1759
      %v1922 = vunpack.c.h.b16 %v1759
      %v1923 = vunpack.c.l.b16 %v1760
      %v1924 = vunpack.c.h.b16 %v1760
      %v1925 = vunpack.c.l.b16 %v1761
      %v1926 = vunpack.c.h.b16 %v1761
      %v1927 = vunpack.c.l.b16 %v1762
      %v1928 = vunpack.c.h.b16 %v1762
      %v1929 = vunpack.c.l.b16 %v1763
      %v1930 = vunpack.c.h.b16 %v1763
      %v1931 = vunpack.c.l.b16 %v1764
      %v1932 = vunpack.c.h.b16 %v1764
      %v1933 = vunpack.c.l.b16 %v1765
      %v1934 = vunpack.c.h.b16 %v1765
      %v1935 = vunpack.c.l.b16 %v1766
      %v1936 = vunpack.c.h.b16 %v1766
      %v1937 = vunpack.c.l.b16 %v1767
      %v1938 = vunpack.c.h.b16 %v1767
      %v1939 = vunpack.c.l.b16 %v1768
      %v1940 = vunpack.c.h.b16 %v1768
      %v1941 = vpack.c.b16 %v1845, %v1829
      %v1942 = vpack.c.b16 %v1846, %v1830
      %v1943 = vpack.c.b16 %v1847, %v1831
      %v1944 = vpack.c.b16 %v1848, %v1832
      %v1945 = vpack.c.b16 %v1849, %v1833
      %v1946 = vpack.c.b16 %v1850, %v1834
      %v1947 = vpack.c.b16 %v1851, %v1835
      %v1948 = vpack.c.b16 %v1852, %v1836
      %v1949 = vpack.c.b16 %v1853, %v1837
      %v1950 = vpack.c.b16 %v1854, %v1838
      %v1951 = vpack.c.b16 %v1855, %v1839
      %v1952 = vpack.c.b16 %v1856, %v1840
      %v1953 = vpack.c.b16 %v1857, %v1841
      %v1954 = vpack.c.b16 %v1858, %v1842
      %v1955 = vpack.c.b16 %v1859, %v1843
      %v1956 = vpack.c.b16 %v1860, %v1844
      %v1957 = vpack.c.b16 %v1877, %v1861
      %v1958 = vpack.c.b16 %v1878, %v1862
      %v1959 = vpack.c.b16 %v1879, %v1863
      %v1960 = vpack.c.b16 %v1880, %v1864
      %v1961 = vpack.c.b16 %v1881, %v1865
      %v1962 = vpack.c.b16 %v1882, %v1866
      %v1963 = vpack.c.b16 %v1883, %v1867
      %v1964 = vpack.c.b16 %v1884, %v1868
      %v1965 = vpack.c.b16 %v1885, %v1869
      %v1966 = vpack.c.b16 %v1886, %v1870
      %v1967 = vpack.c.b16 %v1887, %v1871
      %v1968 = vpack.c.b16 %v1888, %v1872
      %v1969 = vpack.c.b16 %v1889, %v1873
      %v1970 = vpack.c.b16 %v1890, %v1874
      %v1971 = vpack.c.b16 %v1891, %v1875
      %v1972 = vpack.c.b16 %v1892, %v1876
      %v1973 = vpack.c.b16 %v1909, %v1893
      %v1974 = vpack.c.b16 %v1910, %v1894
      %v1975 = vpack.c.b16 %v1911, %v1895
      %v1976 = vpack.c.b16 %v1912, %v1896
      %v1977 = vpack.c.b16 %v1913, %v1897
      %v1978 = vpack.c.b16 %v1914, %v1898
      %v1979 = vpack.c.b16 %v1915, %v1899
      %v1980 = vpack.c.b16 %v1916, %v1900
      %v1981 = vpack.c.b16 %v1917, %v1901
      %v1982 = vpack.c.b16 %v1918, %v1902
      %v1983 = vpack.c.b16 %v1919, %v1903
      %v1984 = vpack.c.b16 %v1920, %v1904
      %v1985 = vpack.c.b16 %v1921, %v1905
      %v1986 = vpack.c.b16 %v1922, %v1906
      %v1987 = vpack.c.b16 %v1923, %v1907
      %v1988 = vpack.c.b16 %v1924, %v1908
      %v1989 = vpack.c.b16 %v1925, %v1925
      %v1990 = vpack.c.b16 %v1926, %v1926
      %v1991 = vpack.c.b16 %v1927, %v1927
      %v1992 = vpack.c.b16 %v1928, %v1928
      %v1993 = vpack.c.b16 %v1929, %v1929
      %v1994 = vpack.c.b16 %v1930, %v1930
      %v1995 = vpack.c.b16 %v1931, %v1931
      %v1996 = vpack.c.b16 %v1932, %v1932
      %v1997 = vpack.c.b16 %v1933, %v1933
      %v1998 = vpack.c.b16 %v1934, %v1934
      %v1999 = vpack.c.b16 %v1935, %v1935
      %v2000 = vpack.c.b16 %v1936, %v1936
      %v2001 = vpack.c.b16 %v1937, %v1937
      %v2002 = vpack.c.b16 %v1938, %v1938
      %v2003 = vpack.c.b16 %v1939, %v1939
      %v2004 = vpack.c.b16 %v1940, %v1940
      %v2054 = vsel %vm641, %v1772, 0
      %v2057 = vsel %vm645, %v1989, 0
      %v2060 = vsel %vm645, %v1990, 0
      %v2063 = vsel %vm645, %v1991, 0
      %v2066 = vsel %vm645, %v1992, 0
      %v2069 = vsel %vm645, %v1993, 0
      %v2072 = vsel %vm645, %v1994, 0
      %v2075 = vsel %vm645, %v1995, 0
      %v2078 = vsel %vm645, %v1996, 0
      %v2081 = vsel %vm645, %v1997, 0
      %v2084 = vsel %vm645, %v1998, 0
      %v2087 = vsel %vm645, %v1999, 0
      %v2090 = vsel %vm645, %v2000, 0
      %v2093 = vsel %vm645, %v2001, 0
      %v2096 = vsel %vm645, %v2002, 0
      %v2099 = vsel %vm645, %v2003, 0
      %v2102 = vsel %vm645, %v2004, 0
      %2104 = vmatprep.subr.bf16.mxu0 %v1942
      %2105 = vmatpush1.bf16.msra.mxu0 %v1941
      %2106 = vmatprep.subr.bf16.mxu0 %v1958
      %2107 = vmatpush1.bf16.msra.mxu0 %v1957
      %2108 = vmatprep.subr.bf16.mxu0 %v1974
      %2109 = vmatpush1.bf16.msra.mxu0 %v1973
      %2110 = vmatprep.subr.bf16.mxu0 %v2060
      %2111 = vmatpush1.bf16.msra.mxu0 %v2057
      %2112 = vmatprep.subr.bf16.mxu0 0
      %2113 = vmatpush1.bf16.msra.mxu0 0
      %2114 = vmatprep.subr.bf16.mxu0 0
      %2115 = vmatpush1.bf16.msra.mxu0 0
      %2116 = vmatprep.subr.bf16.mxu0 0
      %2117 = vmatpush1.bf16.msra.mxu0 0
      %2118 = vmatprep.subr.bf16.mxu0 0
      %2119 = vmatpush1.bf16.msra.mxu0 0
      %2120 = vmatprep.subr.bf16.mxu0 0
      %2121 = vmatpush1.bf16.msra.mxu0 0
      %2122 = vmatprep.subr.bf16.mxu0 0
      %2123 = vmatpush1.bf16.msra.mxu0 0
      %2124 = vmatprep.subr.bf16.mxu0 0
      %2125 = vmatpush1.bf16.msra.mxu0 0
      %2126 = vmatprep.subr.bf16.mxu0 0
      %2127 = vmatpush1.bf16.msra.mxu0 0
      %2128 = vmatprep.subr.bf16.mxu0 0
      %2129 = vmatpush1.bf16.msra.mxu0 0
      %2130 = vmatprep.subr.bf16.mxu0 0
      %2131 = vmatpush1.bf16.msra.mxu0 0
      %2132 = vmatprep.subr.bf16.mxu0 0
      %2133 = vmatpush1.bf16.msra.mxu0 0
      %2134 = vmatprep.subr.bf16.mxu0 0
      %2135 = vmatpush1.bf16.msra.mxu0 0
      %2136 = vmatprep.mubr.bf16.mxu0 0
      %2137 = vmatmul.mubr.bf16.gmra.mrb[0].mxu0 %v2054
      %v2138 = vpop.f32.mrb[0].mxu0
      %v2139 = vadd.f32 0.0, %v2138
      %v2140 = vpop.f32.mrb[0].mxu0
      %v2141 = vadd.f32 0.0, %v2140
      %v2142 = vpop.f32.mrb[0].mxu0
      %v2143 = vadd.f32 0.0, %v2142
      %v2144 = vpop.f32.mrb[0].mxu0
      %v2145 = vadd.f32 0.0, %v2144
      %2146 = vdwg.mxu0
      %2147 = vmatprep.subr.bf16.mxu0 %v1944
      %2148 = vmatpush1.bf16.msra.mxu0 %v1943
      %2149 = vmatprep.subr.bf16.mxu0 %v1960
      %2150 = vmatpush1.bf16.msra.mxu0 %v1959
      %2151 = vmatprep.subr.bf16.mxu0 %v1976
      %2152 = vmatpush1.bf16.msra.mxu0 %v1975
      %2153 = vmatprep.subr.bf16.mxu0 %v2066
      %2154 = vmatpush1.bf16.msra.mxu0 %v2063
      %2155 = vmatprep.subr.bf16.mxu0 0
      %2156 = vmatpush1.bf16.msra.mxu0 0
      %2157 = vmatprep.subr.bf16.mxu0 0
      %2158 = vmatpush1.bf16.msra.mxu0 0
      %2159 = vmatprep.subr.bf16.mxu0 0
      %2160 = vmatpush1.bf16.msra.mxu0 0
      %2161 = vmatprep.subr.bf16.mxu0 0
      %2162 = vmatpush1.bf16.msra.mxu0 0
      %2163 = vmatprep.subr.bf16.mxu0 0
      %2164 = vmatpush1.bf16.msra.mxu0 0
      %2165 = vmatprep.subr.bf16.mxu0 0
      %2166 = vmatpush1.bf16.msra.mxu0 0
      %2167 = vmatprep.subr.bf16.mxu0 0
      %2168 = vmatpush1.bf16.msra.mxu0 0
      %2169 = vmatprep.subr.bf16.mxu0 0
      %2170 = vmatpush1.bf16.msra.mxu0 0
      %2171 = vmatprep.subr.bf16.mxu0 0
      %2172 = vmatpush1.bf16.msra.mxu0 0
      %2173 = vmatprep.subr.bf16.mxu0 0
      %2174 = vmatpush1.bf16.msra.mxu0 0
      %2175 = vmatprep.subr.bf16.mxu0 0
      %2176 = vmatpush1.bf16.msra.mxu0 0
      %2177 = vmatprep.subr.bf16.mxu0 0
      %2178 = vmatpush1.bf16.msra.mxu0 0
      %2179 = vmatprep.mubr.bf16.mxu0 0
      %2180 = vmatmul.mubr.bf16.gmra.mrb[0].mxu0 %v2054
      %v2181 = vpop.f32.mrb[0].mxu0
      %v2182 = vadd.f32 0.0, %v2181
      %v2183 = vpop.f32.mrb[0].mxu0
      %v2184 = vadd.f32 0.0, %v2183
      %v2185 = vpop.f32.mrb[0].mxu0
      %v2186 = vadd.f32 0.0, %v2185
      %v2187 = vpop.f32.mrb[0].mxu0
      %v2188 = vadd.f32 0.0, %v2187
      %2189 = vdwg.mxu0
      %2190 = vmatprep.subr.bf16.mxu0 %v1946
      %2191 = vmatpush1.bf16.msra.mxu0 %v1945
      %2192 = vmatprep.subr.bf16.mxu0 %v1962
      %2193 = vmatpush1.bf16.msra.mxu0 %v1961
      %2194 = vmatprep.subr.bf16.mxu0 %v1978
      %2195 = vmatpush1.bf16.msra.mxu0 %v1977
      %2196 = vmatprep.subr.bf16.mxu0 %v2072
      %2197 = vmatpush1.bf16.msra.mxu0 %v2069
      %2198 = vmatprep.subr.bf16.mxu0 0
      %2199 = vmatpush1.bf16.msra.mxu0 0
      %2200 = vmatprep.subr.bf16.mxu0 0
      %2201 = vmatpush1.bf16.msra.mxu0 0
      %2202 = vmatprep.subr.bf16.mxu0 0
      %2203 = vmatpush1.bf16.msra.mxu0 0
      %2204 = vmatprep.subr.bf16.mxu0 0
      %2205 = vmatpush1.bf16.msra.mxu0 0
      %2206 = vmatprep.subr.bf16.mxu0 0
      %2207 = vmatpush1.bf16.msra.mxu0 0
      %2208 = vmatprep.subr.bf16.mxu0 0
      %2209 = vmatpush1.bf16.msra.mxu0 0
      %2210 = vmatprep.subr.bf16.mxu0 0
      %2211 = vmatpush1.bf16.msra.mxu0 0
      %2212 = vmatprep.subr.bf16.mxu0 0
      %2213 = vmatpush1.bf16.msra.mxu0 0
      %2214 = vmatprep.subr.bf16.mxu0 0
      %2215 = vmatpush1.bf16.msra.mxu0 0
      %2216 = vmatprep.subr.bf16.mxu0 0
      %2217 = vmatpush1.bf16.msra.mxu0 0
      %2218 = vmatprep.subr.bf16.mxu0 0
      %2219 = vmatpush1.bf16.msra.mxu0 0
      %2220 = vmatprep.subr.bf16.mxu0 0
      %2221 = vmatpush1.bf16.msra.mxu0 0
      %2222 = vmatprep.mubr.bf16.mxu0 0
      %2223 = vmatmul.mubr.bf16.gmra.mrb[0].mxu0 %v2054
      %v2224 = vpop.f32.mrb[0].mxu0
      %v2225 = vadd.f32 0.0, %v2224
      %v2226 = vpop.f32.mrb[0].mxu0
      %v2227 = vadd.f32 0.0, %v2226
      %v2228 = vpop.f32.mrb[0].mxu0
      %v2229 = vadd.f32 0.0, %v2228
      %v2230 = vpop.f32.mrb[0].mxu0
      %v2231 = vadd.f32 0.0, %v2230
      %2232 = vdwg.mxu0
      %2233 = vmatprep.subr.bf16.mxu0 %v1948
      %2234 = vmatpush1.bf16.msra.mxu0 %v1947
      %2235 = vmatprep.subr.bf16.mxu0 %v1964
      %2236 = vmatpush1.bf16.msra.mxu0 %v1963
      %2237 = vmatprep.subr.bf16.mxu0 %v1980
      %2238 = vmatpush1.bf16.msra.mxu0 %v1979
      %2239 = vmatprep.subr.bf16.mxu0 %v2078
      %2240 = vmatpush1.bf16.msra.mxu0 %v2075
      %2241 = vmatprep.subr.bf16.mxu0 0
      %2242 = vmatpush1.bf16.msra.mxu0 0
      %2243 = vmatprep.subr.bf16.mxu0 0
      %2244 = vmatpush1.bf16.msra.mxu0 0
      %2245 = vmatprep.subr.bf16.mxu0 0
      %2246 = vmatpush1.bf16.msra.mxu0 0
      %2247 = vmatprep.subr.bf16.mxu0 0
      %2248 = vmatpush1.bf16.msra.mxu0 0
      %2249 = vmatprep.subr.bf16.mxu0 0
      %2250 = vmatpush1.bf16.msra.mxu0 0
      %2251 = vmatprep.subr.bf16.mxu0 0
      %2252 = vmatpush1.bf16.msra.mxu0 0
      %2253 = vmatprep.subr.bf16.mxu0 0
      %2254 = vmatpush1.bf16.msra.mxu0 0
      %2255 = vmatprep.subr.bf16.mxu0 0
      %2256 = vmatpush1.bf16.msra.mxu0 0
      %2257 = vmatprep.subr.bf16.mxu0 0
      %2258 = vmatpush1.bf16.msra.mxu0 0
      %2259 = vmatprep.subr.bf16.mxu0 0
      %2260 = vmatpush1.bf16.msra.mxu0 0
      %2261 = vmatprep.subr.bf16.mxu0 0
      %2262 = vmatpush1.bf16.msra.mxu0 0
      %2263 = vmatprep.subr.bf16.mxu0 0
      %2264 = vmatpush1.bf16.msra.mxu0 0
      %2265 = vmatprep.mubr.bf16.mxu0 0
      %2266 = vmatmul.mubr.bf16.gmra.mrb[0].mxu0 %v2054
      %v2267 = vpop.f32.mrb[0].mxu0
      %v2268 = vadd.f32 0.0, %v2267
      %v2269 = vpop.f32.mrb[0].mxu0
      %v2270 = vadd.f32 0.0, %v2269
      %v2271 = vpop.f32.mrb[0].mxu0
      %v2272 = vadd.f32 0.0, %v2271
      %v2273 = vpop.f32.mrb[0].mxu0
      %v2274 = vadd.f32 0.0, %v2273
      %2275 = vdwg.mxu0
      %2276 = vmatprep.subr.bf16.mxu0 %v1950
      %2277 = vmatpush1.bf16.msra.mxu0 %v1949
      %2278 = vmatprep.subr.bf16.mxu0 %v1966
      %2279 = vmatpush1.bf16.msra.mxu0 %v1965
      %2280 = vmatprep.subr.bf16.mxu0 %v1982
      %2281 = vmatpush1.bf16.msra.mxu0 %v1981
      %2282 = vmatprep.subr.bf16.mxu0 %v2084
      %2283 = vmatpush1.bf16.msra.mxu0 %v2081
      %2284 = vmatprep.subr.bf16.mxu0 0
      %2285 = vmatpush1.bf16.msra.mxu0 0
      %2286 = vmatprep.subr.bf16.mxu0 0
      %2287 = vmatpush1.bf16.msra.mxu0 0
      %2288 = vmatprep.subr.bf16.mxu0 0
      %2289 = vmatpush1.bf16.msra.mxu0 0
      %2290 = vmatprep.subr.bf16.mxu0 0
      %2291 = vmatpush1.bf16.msra.mxu0 0
      %2292 = vmatprep.subr.bf16.mxu0 0
      %2293 = vmatpush1.bf16.msra.mxu0 0
      %2294 = vmatprep.subr.bf16.mxu0 0
      %2295 = vmatpush1.bf16.msra.mxu0 0
      %2296 = vmatprep.subr.bf16.mxu0 0
      %2297 = vmatpush1.bf16.msra.mxu0 0
      %2298 = vmatprep.subr.bf16.mxu0 0
      %2299 = vmatpush1.bf16.msra.mxu0 0
      %2300 = vmatprep.subr.bf16.mxu0 0
      %2301 = vmatpush1.bf16.msra.mxu0 0
      %2302 = vmatprep.subr.bf16.mxu0 0
      %2303 = vmatpush1.bf16.msra.mxu0 0
      %2304 = vmatprep.subr.bf16.mxu0 0
      %2305 = vmatpush1.bf16.msra.mxu0 0
      %2306 = vmatprep.subr.bf16.mxu0 0
      %2307 = vmatpush1.bf16.msra.mxu0 0
      %2308 = vmatprep.mubr.bf16.mxu0 0
      %2309 = vmatmul.mubr.bf16.gmra.mrb[0].mxu0 %v2054
      %v2310 = vpop.f32.mrb[0].mxu0
      %v2311 = vadd.f32 0.0, %v2310
      %v2312 = vpop.f32.mrb[0].mxu0
      %v2313 = vadd.f32 0.0, %v2312
      %v2314 = vpop.f32.mrb[0].mxu0
      %v2315 = vadd.f32 0.0, %v2314
      %v2316 = vpop.f32.mrb[0].mxu0
      %v2317 = vadd.f32 0.0, %v2316
      %2318 = vdwg.mxu0
      %2319 = vmatprep.subr.bf16.mxu0 %v1952
      %2320 = vmatpush1.bf16.msra.mxu0 %v1951
      %2321 = vmatprep.subr.bf16.mxu0 %v1968
      %2322 = vmatpush1.bf16.msra.mxu0 %v1967
      %2323 = vmatprep.subr.bf16.mxu0 %v1984
      %2324 = vmatpush1.bf16.msra.mxu0 %v1983
      %2325 = vmatprep.subr.bf16.mxu0 %v2090
      %2326 = vmatpush1.bf16.msra.mxu0 %v2087
      %2327 = vmatprep.subr.bf16.mxu0 0
      %2328 = vmatpush1.bf16.msra.mxu0 0
      %2329 = vmatprep.subr.bf16.mxu0 0
      %2330 = vmatpush1.bf16.msra.mxu0 0
      %2331 = vmatprep.subr.bf16.mxu0 0
      %2332 = vmatpush1.bf16.msra.mxu0 0
      %2333 = vmatprep.subr.bf16.mxu0 0
      %2334 = vmatpush1.bf16.msra.mxu0 0
      %2335 = vmatprep.subr.bf16.mxu0 0
      %2336 = vmatpush1.bf16.msra.mxu0 0
      %2337 = vmatprep.subr.bf16.mxu0 0
      %2338 = vmatpush1.bf16.msra.mxu0 0
      %2339 = vmatprep.subr.bf16.mxu0 0
      %2340 = vmatpush1.bf16.msra.mxu0 0
      %2341 = vmatprep.subr.bf16.mxu0 0
      %2342 = vmatpush1.bf16.msra.mxu0 0
      %2343 = vmatprep.subr.bf16.mxu0 0
      %2344 = vmatpush1.bf16.msra.mxu0 0
      %2345 = vmatprep.subr.bf16.mxu0 0
      %2346 = vmatpush1.bf16.msra.mxu0 0
      %2347 = vmatprep.subr.bf16.mxu0 0
      %2348 = vmatpush1.bf16.msra.mxu0 0
      %2349 = vmatprep.subr.bf16.mxu0 0
      %2350 = vmatpush1.bf16.msra.mxu0 0
      %2351 = vmatprep.mubr.bf16.mxu0 0
      %2352 = vmatmul.mubr.bf16.gmra.mrb[0].mxu0 %v2054
      %v2353 = vpop.f32.mrb[0].mxu0
      %v2354 = vadd.f32 0.0, %v2353
      %v2355 = vpop.f32.mrb[0].mxu0
      %v2356 = vadd.f32 0.0, %v2355
      %v2357 = vpop.f32.mrb[0].mxu0
      %v2358 = vadd.f32 0.0, %v2357
      %v2359 = vpop.f32.mrb[0].mxu0
      %v2360 = vadd.f32 0.0, %v2359
      %2361 = vdwg.mxu0
      %2362 = vmatprep.subr.bf16.mxu0 %v1954
      %2363 = vmatpush1.bf16.msra.mxu0 %v1953
      %2364 = vmatprep.subr.bf16.mxu0 %v1970
      %2365 = vmatpush1.bf16.msra.mxu0 %v1969
      %2366 = vmatprep.subr.bf16.mxu0 %v1986
      %2367 = vmatpush1.bf16.msra.mxu0 %v1985
      %2368 = vmatprep.subr.bf16.mxu0 %v2096
      %2369 = vmatpush1.bf16.msra.mxu0 %v2093
      %2370 = vmatprep.subr.bf16.mxu0 0
      %2371 = vmatpush1.bf16.msra.mxu0 0
      %2372 = vmatprep.subr.bf16.mxu0 0
      %2373 = vmatpush1.bf16.msra.mxu0 0
      %2374 = vmatprep.subr.bf16.mxu0 0
      %2375 = vmatpush1.bf16.msra.mxu0 0
      %2376 = vmatprep.subr.bf16.mxu0 0
      %2377 = vmatpush1.bf16.msra.mxu0 0
      %2378 = vmatprep.subr.bf16.mxu0 0
      %2379 = vmatpush1.bf16.msra.mxu0 0
      %2380 = vmatprep.subr.bf16.mxu0 0
      %2381 = vmatpush1.bf16.msra.mxu0 0
      %2382 = vmatprep.subr.bf16.mxu0 0
      %2383 = vmatpush1.bf16.msra.mxu0 0
      %2384 = vmatprep.subr.bf16.mxu0 0
      %2385 = vmatpush1.bf16.msra.mxu0 0
      %2386 = vmatprep.subr.bf16.mxu0 0
      %2387 = vmatpush1.bf16.msra.mxu0 0
      %2388 = vmatprep.subr.bf16.mxu0 0
      %2389 = vmatpush1.bf16.msra.mxu0 0
      %2390 = vmatprep.subr.bf16.mxu0 0
      %2391 = vmatpush1.bf16.msra.mxu0 0
      %2392 = vmatprep.subr.bf16.mxu0 0
      %2393 = vmatpush1.bf16.msra.mxu0 0
      %2394 = vmatprep.mubr.bf16.mxu0 0
      %2395 = vmatmul.mubr.bf16.gmra.mrb[0].mxu0 %v2054
      %v2396 = vpop.f32.mrb[0].mxu0
      %v2397 = vadd.f32 0.0, %v2396
      %v2398 = vpop.f32.mrb[0].mxu0
      %v2399 = vadd.f32 0.0, %v2398
      %v2400 = vpop.f32.mrb[0].mxu0
      %v2401 = vadd.f32 0.0, %v2400
      %v2402 = vpop.f32.mrb[0].mxu0
      %v2403 = vadd.f32 0.0, %v2402
      %2404 = vdwg.mxu0
      %2405 = vmatprep.subr.bf16.mxu0 %v1956
      %2406 = vmatpush1.bf16.msra.mxu0 %v1955
      %2407 = vmatprep.subr.bf16.mxu0 %v1972
      %2408 = vmatpush1.bf16.msra.mxu0 %v1971
      %2409 = vmatprep.subr.bf16.mxu0 %v1988
      %2410 = vmatpush1.bf16.msra.mxu0 %v1987
      %2411 = vmatprep.subr.bf16.mxu0 %v2102
      %2412 = vmatpush1.bf16.msra.mxu0 %v2099
      %2413 = vmatprep.subr.bf16.mxu0 0
      %2414 = vmatpush1.bf16.msra.mxu0 0
      %2415 = vmatprep.subr.bf16.mxu0 0
      %2416 = vmatpush1.bf16.msra.mxu0 0
      %2417 = vmatprep.subr.bf16.mxu0 0
      %2418 = vmatpush1.bf16.msra.mxu0 0
      %2419 = vmatprep.subr.bf16.mxu0 0
      %2420 = vmatpush1.bf16.msra.mxu0 0
      %2421 = vmatprep.subr.bf16.mxu0 0
      %2422 = vmatpush1.bf16.msra.mxu0 0
      %2423 = vmatprep.subr.bf16.mxu0 0
      %2424 = vmatpush1.bf16.msra.mxu0 0
      %2425 = vmatprep.subr.bf16.mxu0 0
      %2426 = vmatpush1.bf16.msra.mxu0 0
      %2427 = vmatprep.subr.bf16.mxu0 0
      %2428 = vmatpush1.bf16.msra.mxu0 0
      %2429 = vmatprep.subr.bf16.mxu0 0
      %2430 = vmatpush1.bf16.msra.mxu0 0
      %2431 = vmatprep.subr.bf16.mxu0 0
      %2432 = vmatpush1.bf16.msra.mxu0 0
      %2433 = vmatprep.subr.bf16.mxu0 0
      %2434 = vmatpush1.bf16.msra.mxu0 0
      %2435 = vmatprep.subr.bf16.mxu0 0
      %2436 = vmatpush1.bf16.msra.mxu0 0
      %2437 = vmatprep.mubr.bf16.mxu0 0
      %2438 = vmatmul.mubr.bf16.gmra.mrb[0].mxu0 %v2054
      %v2439 = vpop.f32.mrb[0].mxu0
      %v2440 = vadd.f32 0.0, %v2439
      %v2441 = vpop.f32.mrb[0].mxu0
      %v2442 = vadd.f32 0.0, %v2441
      %v2443 = vpop.f32.mrb[0].mxu0
      %v2444 = vadd.f32 0.0, %v2443
      %v2445 = vpop.f32.mrb[0].mxu0
      %v2446 = vadd.f32 0.0, %v2445
      %2447 = vdwg.mxu0
      %v2448 = vadd.f32 %v1403, %v2139
      %v2449 = vadd.f32 %v1405, %v2141
      %v2450 = vadd.f32 %v1446, %v2182
      %v2451 = vadd.f32 %v1448, %v2184
      %v2452 = vadd.f32 %v1489, %v2225
      %v2453 = vadd.f32 %v1491, %v2227
      %v2454 = vadd.f32 %v1532, %v2268
      %v2455 = vadd.f32 %v1534, %v2270
      %v2456 = vadd.f32 %v1575, %v2311
      %v2457 = vadd.f32 %v1577, %v2313
      %v2458 = vadd.f32 %v1618, %v2354
      %v2459 = vadd.f32 %v1620, %v2356
      %v2460 = vadd.f32 %v1661, %v2397
      %v2461 = vadd.f32 %v1663, %v2399
      %v2462 = vadd.f32 %v1704, %v2440
      %v2463 = vadd.f32 %v1706, %v2442
      %v2464 = vadd.f32 %v1407, %v2143
      %v2465 = vadd.f32 %v1409, %v2145
      %v2466 = vadd.f32 %v1450, %v2186
      %v2467 = vadd.f32 %v1452, %v2188
      %v2468 = vadd.f32 %v1493, %v2229
      %v2469 = vadd.f32 %v1495, %v2231
      %v2470 = vadd.f32 %v1536, %v2272
      %v2471 = vadd.f32 %v1538, %v2274
      %v2472 = vadd.f32 %v1579, %v2315
      %v2473 = vadd.f32 %v1581, %v2317
      %v2474 = vadd.f32 %v1622, %v2358
      %v2475 = vadd.f32 %v1624, %v2360
      %v2476 = vadd.f32 %v1665, %v2401
      %v2477 = vadd.f32 %v1667, %v2403
      %v2478 = vadd.f32 %v1708, %v2444
      %v2479 = vadd.f32 %v1710, %v2446
      %v2480 = vld [vmem:[%s2] sm:$0xff]
      %v2481 = vld [vmem:[%s2 + $0x8] sm:$0xff]
      %v2484 = vlaneseq
      %v2485 = vshrl.u32 %v2484, 7
      %v2486 = vsub.s32 0, %v2485
      %v2487 = vrot.slane %v2480, %v2486
      %v2488 = vlaneseq
      %v2489 = vshrl.u32 %v2488, 7
      %v2490 = vsub.s32 1, %v2489
      %v2491 = vrot.slane %v2480, %v2490
      %v2492 = vlaneseq
      %v2493 = vshrl.u32 %v2492, 7
      %v2494 = vsub.s32 2, %v2493
      %v2495 = vrot.slane %v2480, %v2494
      %v2496 = vlaneseq
      %v2497 = vshrl.u32 %v2496, 7
      %v2498 = vsub.s32 3, %v2497
      %v2499 = vrot.slane %v2480, %v2498
      %v2500 = vlaneseq
      %v2501 = vshrl.u32 %v2500, 7
      %v2502 = vsub.s32 4, %v2501
      %v2503 = vrot.slane %v2480, %v2502
      %v2504 = vlaneseq
      %v2505 = vshrl.u32 %v2504, 7
      %v2506 = vsub.s32 5, %v2505
      %v2507 = vrot.slane %v2480, %v2506
      %v2508 = vlaneseq
      %v2509 = vshrl.u32 %v2508, 7
      %v2510 = vsub.s32 6, %v2509
      %v2511 = vrot.slane %v2480, %v2510
      %v2512 = vlaneseq
      %v2513 = vshrl.u32 %v2512, 7
      %v2514 = vsub.s32 7, %v2513
      %v2515 = vrot.slane %v2480, %v2514
      %v2516 = vlaneseq
      %v2517 = vshrl.u32 %v2516, 7
      %v2518 = vsub.s32 0, %v2517
      %v2519 = vrot.slane %v2481, %v2518
      %v2520 = vlaneseq
      %v2521 = vshrl.u32 %v2520, 7
      %v2522 = vsub.s32 1, %v2521
      %v2523 = vrot.slane %v2481, %v2522
      %v2524 = vlaneseq
      %v2525 = vshrl.u32 %v2524, 7
      %v2526 = vsub.s32 2, %v2525
      %v2527 = vrot.slane %v2481, %v2526
      %v2528 = vlaneseq
      %v2529 = vshrl.u32 %v2528, 7
      %v2530 = vsub.s32 3, %v2529
      %v2531 = vrot.slane %v2481, %v2530
      %v2532 = vlaneseq
      %v2533 = vshrl.u32 %v2532, 7
      %v2534 = vsub.s32 4, %v2533
      %v2535 = vrot.slane %v2481, %v2534
      %v2536 = vlaneseq
      %v2537 = vshrl.u32 %v2536, 7
      %v2538 = vsub.s32 5, %v2537
      %v2539 = vrot.slane %v2481, %v2538
      %v2540 = vlaneseq
      %v2541 = vshrl.u32 %v2540, 7
      %v2542 = vsub.s32 6, %v2541
      %v2543 = vrot.slane %v2481, %v2542
      %v2544 = vlaneseq
      %v2545 = vshrl.u32 %v2544, 7
      %v2546 = vsub.s32 7, %v2545
      %v2547 = vrot.slane %v2481, %v2546
      %v2564 = vadd.f32 %v2448, %v2487
      %v2565 = vadd.f32 %v2449, %v2491
      %v2566 = vadd.f32 %v2450, %v2495
      %v2567 = vadd.f32 %v2451, %v2499
      %v2568 = vadd.f32 %v2452, %v2503
      %v2569 = vadd.f32 %v2453, %v2507
      %v2570 = vadd.f32 %v2454, %v2511
      %v2571 = vadd.f32 %v2455, %v2515
      %v2572 = vadd.f32 %v2456, %v2519
      %v2573 = vadd.f32 %v2457, %v2523
      %v2574 = vadd.f32 %v2458, %v2527
      %v2575 = vadd.f32 %v2459, %v2531
      %v2576 = vadd.f32 %v2460, %v2535
      %v2577 = vadd.f32 %v2461, %v2539
      %v2578 = vadd.f32 %v2462, %v2543
      %v2579 = vadd.f32 %v2463, %v2547
      %v2580 = vadd.f32 %v2464, %v2487
      %v2581 = vadd.f32 %v2465, %v2491
      %v2582 = vadd.f32 %v2466, %v2495
      %v2583 = vadd.f32 %v2467, %v2499
      %v2584 = vadd.f32 %v2468, %v2503
      %v2585 = vadd.f32 %v2469, %v2507
      %v2586 = vadd.f32 %v2470, %v2511
      %v2587 = vadd.f32 %v2471, %v2515
      %v2588 = vadd.f32 %v2472, %v2519
      %v2589 = vadd.f32 %v2473, %v2523
      %v2590 = vadd.f32 %v2474, %v2527
      %v2591 = vadd.f32 %v2475, %v2531
      %v2592 = vadd.f32 %v2476, %v2535
      %v2593 = vadd.f32 %v2477, %v2539
      %v2594 = vadd.f32 %v2478, %v2543
      %v2595 = vadd.f32 %v2479, %v2547
      %v2596 = vmax.f32 %v2564, 0.0
      %v2597 = vmax.f32 %v2565, 0.0
      %v2598 = vmax.f32 %v2566, 0.0
      %v2599 = vmax.f32 %v2567, 0.0
      %v2600 = vmax.f32 %v2568, 0.0
      %v2601 = vmax.f32 %v2569, 0.0
      %v2602 = vmax.f32 %v2570, 0.0
      %v2603 = vmax.f32 %v2571, 0.0
      %v2604 = vmax.f32 %v2572, 0.0
      %v2605 = vmax.f32 %v2573, 0.0
      %v2606 = vmax.f32 %v2574, 0.0
      %v2607 = vmax.f32 %v2575, 0.0
      %v2608 = vmax.f32 %v2576, 0.0
      %v2609 = vmax.f32 %v2577, 0.0
      %v2610 = vmax.f32 %v2578, 0.0
      %v2611 = vmax.f32 %v2579, 0.0
      %v2612 = vmax.f32 %v2580, 0.0
      %v2613 = vmax.f32 %v2581, 0.0
      %v2614 = vmax.f32 %v2582, 0.0
      %v2615 = vmax.f32 %v2583, 0.0
      %v2616 = vmax.f32 %v2584, 0.0
      %v2617 = vmax.f32 %v2585, 0.0
      %v2618 = vmax.f32 %v2586, 0.0
      %v2619 = vmax.f32 %v2587, 0.0
      %v2620 = vmax.f32 %v2588, 0.0
      %v2621 = vmax.f32 %v2589, 0.0
      %v2622 = vmax.f32 %v2590, 0.0
      %v2623 = vmax.f32 %v2591, 0.0
      %v2624 = vmax.f32 %v2592, 0.0
      %v2625 = vmax.f32 %v2593, 0.0
      %v2626 = vmax.f32 %v2594, 0.0
      %v2627 = vmax.f32 %v2595, 0.0
      %v2628 = vadd.f32 %v2596, %v2612
      %v2629 = vrot.slane %v2628, 4
      %v2630 = vadd.f32 %v2628, %v2629
      %v2631 = vrot.slane %v2630, 2
      %v2632 = vadd.f32 %v2630, %v2631
      %v2633 = vrot.slane %v2632, 1
      %v2634 = vadd.f32 %v2632, %v2633
      %v2635 = vadd.f32 %v2597, %v2613
      %v2636 = vrot.slane %v2635, 4
      %v2637 = vadd.f32 %v2635, %v2636
      %v2638 = vrot.slane %v2637, 2
      %v2639 = vadd.f32 %v2637, %v2638
      %v2640 = vrot.slane %v2639, 1
      %v2641 = vadd.f32 %v2639, %v2640
      %v2642 = vadd.f32 %v2598, %v2614
      %v2643 = vrot.slane %v2642, 4
      %v2644 = vadd.f32 %v2642, %v2643
      %v2645 = vrot.slane %v2644, 2
      %v2646 = vadd.f32 %v2644, %v2645
      %v2647 = vrot.slane %v2646, 1
      %v2648 = vadd.f32 %v2646, %v2647
      %v2649 = vadd.f32 %v2599, %v2615
      %v2650 = vrot.slane %v2649, 4
      %v2651 = vadd.f32 %v2649, %v2650
      %v2652 = vrot.slane %v2651, 2
      %v2653 = vadd.f32 %v2651, %v2652
      %v2654 = vrot.slane %v2653, 1
      %v2655 = vadd.f32 %v2653, %v2654
      %v2656 = vadd.f32 %v2600, %v2616
      %v2657 = vrot.slane %v2656, 4
      %v2658 = vadd.f32 %v2656, %v2657
      %v2659 = vrot.slane %v2658, 2
      %v2660 = vadd.f32 %v2658, %v2659
      %v2661 = vrot.slane %v2660, 1
      %v2662 = vadd.f32 %v2660, %v2661
      %v2663 = vadd.f32 %v2601, %v2617
      %v2664 = vrot.slane %v2663, 4
      %v2665 = vadd.f32 %v2663, %v2664
      %v2666 = vrot.slane %v2665, 2
      %v2667 = vadd.f32 %v2665, %v2666
      %v2668 = vrot.slane %v2667, 1
      %v2669 = vadd.f32 %v2667, %v2668
      %v2670 = vadd.f32 %v2602, %v2618
      %v2671 = vrot.slane %v2670, 4
      %v2672 = vadd.f32 %v2670, %v2671
      %v2673 = vrot.slane %v2672, 2
      %v2674 = vadd.f32 %v2672, %v2673
      %v2675 = vrot.slane %v2674, 1
      %v2676 = vadd.f32 %v2674, %v2675
      %v2677 = vadd.f32 %v2603, %v2619
      %v2678 = vrot.slane %v2677, 4
      %v2679 = vadd.f32 %v2677, %v2678
      %v2680 = vrot.slane %v2679, 2
      %v2681 = vadd.f32 %v2679, %v2680
      %v2682 = vrot.slane %v2681, 1
      %v2683 = vadd.f32 %v2681, %v2682
      %v2684 = vadd.f32 %v2604, %v2620
      %v2685 = vrot.slane %v2684, 4
      %v2686 = vadd.f32 %v2684, %v2685
      %v2687 = vrot.slane %v2686, 2
      %v2688 = vadd.f32 %v2686, %v2687
      %v2689 = vrot.slane %v2688, 1
      %v2690 = vadd.f32 %v2688, %v2689
      %v2691 = vadd.f32 %v2605, %v2621
      %v2692 = vrot.slane %v2691, 4
      %v2693 = vadd.f32 %v2691, %v2692
      %v2694 = vrot.slane %v2693, 2
      %v2695 = vadd.f32 %v2693, %v2694
      %v2696 = vrot.slane %v2695, 1
      %v2697 = vadd.f32 %v2695, %v2696
      %v2698 = vadd.f32 %v2606, %v2622
      %v2699 = vrot.slane %v2698, 4
      %v2700 = vadd.f32 %v2698, %v2699
      %v2701 = vrot.slane %v2700, 2
      %v2702 = vadd.f32 %v2700, %v2701
      %v2703 = vrot.slane %v2702, 1
      %v2704 = vadd.f32 %v2702, %v2703
      %v2705 = vadd.f32 %v2607, %v2623
      %v2706 = vrot.slane %v2705, 4
      %v2707 = vadd.f32 %v2705, %v2706
      %v2708 = vrot.slane %v2707, 2
      %v2709 = vadd.f32 %v2707, %v2708
      %v2710 = vrot.slane %v2709, 1
      %v2711 = vadd.f32 %v2709, %v2710
      %v2712 = vadd.f32 %v2608, %v2624
      %v2713 = vrot.slane %v2712, 4
      %v2714 = vadd.f32 %v2712, %v2713
      %v2715 = vrot.slane %v2714, 2
      %v2716 = vadd.f32 %v2714, %v2715
      %v2717 = vrot.slane %v2716, 1
      %v2718 = vadd.f32 %v2716, %v2717
      %v2719 = vadd.f32 %v2609, %v2625
      %v2720 = vrot.slane %v2719, 4
      %v2721 = vadd.f32 %v2719, %v2720
      %v2722 = vrot.slane %v2721, 2
      %v2723 = vadd.f32 %v2721, %v2722
      %v2724 = vrot.slane %v2723, 1
      %v2725 = vadd.f32 %v2723, %v2724
      %v2726 = vadd.f32 %v2610, %v2626
      %v2727 = vrot.slane %v2726, 4
      %v2728 = vadd.f32 %v2726, %v2727
      %v2729 = vrot.slane %v2728, 2
      %v2730 = vadd.f32 %v2728, %v2729
      %v2731 = vrot.slane %v2730, 1
      %v2732 = vadd.f32 %v2730, %v2731
      %v2733 = vadd.f32 %v2611, %v2627
      %v2734 = vrot.slane %v2733, 4
      %v2735 = vadd.f32 %v2733, %v2734
      %v2736 = vrot.slane %v2735, 2
      %v2737 = vadd.f32 %v2735, %v2736
      %v2738 = vrot.slane %v2737, 1
      %v2739 = vadd.f32 %v2737, %v2738
      %v2740 = vadd.f32 %v2634, %v2641
      %v2741 = vadd.f32 %v2740, %v2648
      %v2742 = vadd.f32 %v2741, %v2655
      %v2743 = vadd.f32 %v2742, %v2662
      %v2744 = vadd.f32 %v2743, %v2669
      %v2745 = vadd.f32 %v2744, %v2676
      %v2746 = vadd.f32 %v2745, %v2683
      %v2747 = vadd.f32 %v2746, %v2690
      %v2748 = vadd.f32 %v2747, %v2697
      %v2749 = vadd.f32 %v2748, %v2704
      %v2750 = vadd.f32 %v2749, %v2711
      %v2751 = vadd.f32 %v2750, %v2718
      %v2752 = vadd.f32 %v2751, %v2725
      %v2753 = vadd.f32 %v2752, %v2732
      %v2754 = vadd.f32 %v2753, %v2739
      %v2755 = vmul.f32 %v2754, 0.00390625
      %v2756 = vpack.c.bf16 %v2755, %v2755
      %v2757 = vld [vmem:[%s3] sm:$0xff]
      %v2758 = vld [vmem:[%s3 + $0x8] sm:$0xff]
      %v2759 = vld [vmem:[%s3 + $0x10] sm:$0xff]
      %v2760 = vld [vmem:[%s3 + $0x18] sm:$0xff]
      %v2761 = vld [vmem:[%s3 + $0x20] sm:$0xff]
      %v2762 = vld [vmem:[%s3 + $0x28] sm:$0xff]
      %v2763 = vld [vmem:[%s3 + $0x30] sm:$0xff]
      %v2764 = vld [vmem:[%s3 + $0x38] sm:$0xff]
      %v2765 = vld [vmem:[%s3 + $0x40] sm:$0xff]
      %v2766 = vld [vmem:[%s3 + $0x48] sm:$0xff]
      %v2767 = vld [vmem:[%s3 + $0x50] sm:$0xff]
      %v2768 = vld [vmem:[%s3 + $0x58] sm:$0xff]
      %v2769 = vld [vmem:[%s3 + $0x60] sm:$0xff]
      %v2770 = vld [vmem:[%s3 + $0x68] sm:$0xff]
      %v2771 = vld [vmem:[%s3 + $0x70] sm:$0xff]
      %v2772 = vld [vmem:[%s3 + $0x78] sm:$0xff]
      %v2773 = vld [vmem:[%s4] sm:$0x3]
      %v2790 = vunpack.c.l.b16 %v2757
      %v2791 = vunpack.c.h.b16 %v2757
      %v2792 = vunpack.c.l.b16 %v2758
      %v2793 = vunpack.c.h.b16 %v2758
      %v2794 = vunpack.c.l.b16 %v2759
      %v2795 = vunpack.c.h.b16 %v2759
      %v2796 = vunpack.c.l.b16 %v2760
      %v2797 = vunpack.c.h.b16 %v2760
      %v2798 = vunpack.c.l.b16 %v2761
      %v2799 = vunpack.c.h.b16 %v2761
      %v2800 = vunpack.c.l.b16 %v2762
      %v2801 = vunpack.c.h.b16 %v2762
      %v2802 = vunpack.c.l.b16 %v2763
      %v2803 = vunpack.c.h.b16 %v2763
      %v2804 = vunpack.c.l.b16 %v2764
      %v2805 = vunpack.c.h.b16 %v2764
      %v2806 = vunpack.c.l.b16 %v2765
      %v2807 = vunpack.c.h.b16 %v2765
      %v2808 = vunpack.c.l.b16 %v2766
      %v2809 = vunpack.c.h.b16 %v2766
      %v2810 = vunpack.c.l.b16 %v2767
      %v2811 = vunpack.c.h.b16 %v2767
      %v2812 = vunpack.c.l.b16 %v2768
      %v2813 = vunpack.c.h.b16 %v2768
      %v2814 = vunpack.c.l.b16 %v2769
      %v2815 = vunpack.c.h.b16 %v2769
      %v2816 = vunpack.c.l.b16 %v2770
      %v2817 = vunpack.c.h.b16 %v2770
      %v2818 = vunpack.c.l.b16 %v2771
      %v2819 = vunpack.c.h.b16 %v2771
      %v2820 = vunpack.c.l.b16 %v2772
      %v2821 = vunpack.c.h.b16 %v2772
      %v2822 = vpack.c.b16 %v2792, %v2790
      %v2823 = vpack.c.b16 %v2793, %v2791
      %v2824 = vpack.c.b16 %v2796, %v2794
      %v2825 = vpack.c.b16 %v2797, %v2795
      %v2826 = vpack.c.b16 %v2800, %v2798
      %v2827 = vpack.c.b16 %v2801, %v2799
      %v2828 = vpack.c.b16 %v2804, %v2802
      %v2829 = vpack.c.b16 %v2805, %v2803
      %v2830 = vpack.c.b16 %v2808, %v2806
      %v2831 = vpack.c.b16 %v2809, %v2807
      %v2832 = vpack.c.b16 %v2812, %v2810
      %v2833 = vpack.c.b16 %v2813, %v2811
      %v2834 = vpack.c.b16 %v2816, %v2814
      %v2835 = vpack.c.b16 %v2817, %v2815
      %v2836 = vpack.c.b16 %v2820, %v2818
      %v2837 = vpack.c.b16 %v2821, %v2819
      %v2855 = vlaneseq
      %v2856 = vshrl.u32 %v2855, 7
      %v2857 = vsub.s32 0, %v2856
      %v2858 = vrot.slane %v2773, %v2857
      %v2859 = vlaneseq
      %v2860 = vshrl.u32 %v2859, 7
      %v2861 = vsub.s32 1, %v2860
      %v2862 = vrot.slane %v2773, %v2861
      %2865 = vmatprep.subr.bf16.mxu0 %v2823
      %2866 = vmatpush1.bf16.msra.mxu0 %v2822
      %2867 = vmatprep.subr.bf16.mxu0 %v2825
      %2868 = vmatpush1.bf16.msra.mxu0 %v2824
      %2869 = vmatprep.subr.bf16.mxu0 %v2827
      %2870 = vmatpush1.bf16.msra.mxu0 %v2826
      %2871 = vmatprep.subr.bf16.mxu0 %v2829
      %2872 = vmatpush1.bf16.msra.mxu0 %v2828
      %2873 = vmatprep.subr.bf16.mxu0 %v2831
      %2874 = vmatpush1.bf16.msra.mxu0 %v2830
      %2875 = vmatprep.subr.bf16.mxu0 %v2833
      %2876 = vmatpush1.bf16.msra.mxu0 %v2832
      %2877 = vmatprep.subr.bf16.mxu0 %v2835
      %2878 = vmatpush1.bf16.msra.mxu0 %v2834
      %2879 = vmatprep.subr.bf16.mxu0 %v2837
      %2880 = vmatpush1.bf16.msra.mxu0 %v2836
      %2881 = vmatprep.subr.bf16.mxu0 0
      %2882 = vmatpush1.bf16.msra.mxu0 0
      %2883 = vmatprep.subr.bf16.mxu0 0
      %2884 = vmatpush1.bf16.msra.mxu0 0
      %2885 = vmatprep.subr.bf16.mxu0 0
      %2886 = vmatpush1.bf16.msra.mxu0 0
      %2887 = vmatprep.subr.bf16.mxu0 0
      %2888 = vmatpush1.bf16.msra.mxu0 0
      %2889 = vmatprep.subr.bf16.mxu0 0
      %2890 = vmatpush1.bf16.msra.mxu0 0
      %2891 = vmatprep.subr.bf16.mxu0 0
      %2892 = vmatpush1.bf16.msra.mxu0 0
      %2893 = vmatprep.subr.bf16.mxu0 0
      %2894 = vmatpush1.bf16.msra.mxu0 0
      %2895 = vmatprep.subr.bf16.mxu0 0
      %2896 = vmatpush1.bf16.msra.mxu0 0
      %2897 = vmatprep.mubr.bf16.mxu0 0
      %2898 = vmatmul.mubr.bf16.gmra.mrb[0].mxu0 %v2756
      %v2899 = vpop.f32.mrb[0].mxu0
      %v2900 = vadd.f32 %v2858, %v2899
      %v2901 = vpop.f32.mrb[0].mxu0
      %v2902 = vadd.f32 %v2862, %v2901
      %v2903 = vpop.f32.mrb[0].mxu0
      %v2904 = vpop.f32.mrb[0].mxu0
      %2905 = vdwg.mxu0
      %v2906 = vmul.f32 %v2900, %v2900
      %vm2907 = vcmask 1040384
      %v2908 = vsel %vm2907, %v2906, 0.0
      %2909 = vadd.xlane.f32.xlu0 %v2908
      %v2910 = vpop.xlane.xlu0 %2909
      %v2911 = vmax.f32 %v2910, 1e-24
      %v2912 = vrsqrt.pop %v2911
      %v2913 = vmul.f32 %v2900, %v2912
      %v2914 = vlaneseq
      %vm2915 = vcmp.ge.s32.totalorder %v2914, 0
      %vm2916 = vcmp.lt.s32.totalorder %v2914, 128
      %vm2917 = vmand %vm2915, %vm2916
      %2918 = vst.msk [vmem:[%s222] sm:$0x1] %vm2917, %v2913
      %vm2919 = vcmp.lt.s32.totalorder %v2914, 1
      %vm2920 = vmand %vm2915, %vm2919
      %2921 = vst.msk [vmem:[%s222 + $0x1] sm:$0x1] %vm2920, %v2902
      %p2922 = scmp.lt.s32.totalorder %s16, 1
      %s2923 = scalar_select %p2922, %s16, 1
      %s2924 = smul.addr %s2923, 2
      %s2925 = scalar_lea.vmem %s5, %s2924
      // Predicated region
      $region41: #{color_model_forward.1} parent=39 // pred_check
        %p2926 = pneg %p144
      $region42: #{color_model_forward.1} parent=39 // pred_check_branch
        %2928 = sbr.rel (%p2926) target = $region44
      $region43: #{color_model_forward.1} parent=39 // pred_region
        _
      $region44: #{color_model_forward.1} parent=39 // pred_fallthru
        _
    $region40: #{color_model_forward.1} parent=5 // pred_fallthru
      _
    %p2929 = scmp.le.s32.totalorder 2, %s11
    // Predicated region
    $region45: #{color_model_forward.1} parent=5 // pred_check
      %p2930 = pneg %p2929
    $region46: #{color_model_forward.1} parent=5 // pred_check_branch
      %2932 = sbr.rel (%p2930) target = $region48
    $region47: #{color_model_forward.1} parent=5 // pred_region
      %s2933 = ssub.s32 %s11, 2
      // Predicated region
      $region49: #{color_model_forward.1} parent=47 // pred_check
        %p2934 = pneg %p150
      $region50: #{color_model_forward.1} parent=47 // pred_check_branch
        %2936 = sbr.rel (%p2934) target = $region52
      $region51: #{color_model_forward.1} parent=47 // pred_region
        %p2937 = scmp.lt.s32.totalorder %s17, 1
        %s2938 = scalar_select %p2937, %s17, 1
        %s2939 = smul.addr %s2938, 2
        %s2940 = scalar_lea.vmem %s5, %s2939
      $region52: #{color_model_forward.1} parent=47 // pred_fallthru
        _
    $region48: #{color_model_forward.1} parent=5 // pred_fallthru
      _
  $region6: #{color_model_forward.1} parent=0 // loop_footer
    %s15 = sadd.s32 1, %s11
  $region7: #{color_model_forward.1} parent=0 // loop_footer_branch
    %10 = sbr.rel target = $region3
  $region8: #{color_model_forward.1} parent=0 // loop_exit
    _

</llo_original>
